<compile_context>
chip_gen: v5e
topology: v5e:2x2
jax: 0.10.0
libtpu: 0.0.40
codegen_flags: <defaults>
</compile_context>

<pallas_src>
import functools

import jax
import jax.numpy as jnp
from jax import lax
from jax.experimental import pallas as pl
from jax.experimental.pallas import tpu as pltpu

BN_EPS = 1e-5


# -----------------------------------------------------------------------------
# Fused Pallas kernel: one launch per Baseblock_SFL block.
# -----------------------------------------------------------------------------
def _block_kernel(x_ref, w1_ref, b1_ref, w2_ref, b2_ref, o_ref, *scratch,
                  conv1_from_patches, has_ds, lane_dense_out,
                  Btile, H, W, Ho, Wo, Cin, planes):
    """conv1(+fused 1x1 downsample)+BN1+ReLU -> conv2+BN2 -> +residual -> ReLU."""
    M = Btile * Ho * Wo
    f32 = jnp.float32
    taps = [(dy, dx) for dy in range(3) for dx in range(3)]

    # ---- conv1 (+ fused downsample); BN1 (and BNd) folded into w1/b1 --------
    if conv1_from_patches:
        # stride != 1: (Btile, Ho*Wo, 9*Cin) patches gathered in the wrapper;
        # conv1 is already a single K=9*Cin MXU matmul.
        pad2_ref, patch2_ref = scratch
        patches1 = x_ref[...].reshape(M, 9 * Cin)
    else:
        xpad_ref, patch1_ref, pad2_ref, patch2_ref = scratch
        # In-kernel zero-padding: zero only the thin halo strips every step
        # (the interior is fully overwritten), then copy the input tile in.
        xpad_ref[:, 0:1, :, :] = jnp.zeros((Btile, 1, W + 2, Cin), f32)
        xpad_ref[:, H + 1:H + 2, :, :] = jnp.zeros((Btile, 1, W + 2, Cin), f32)
        xpad_ref[:, :, 0:1, :] = jnp.zeros((Btile, H + 2, 1, Cin), f32)
        xpad_ref[:, :, W + 1:W + 2, :] = jnp.zeros((Btile, H + 2, 1, Cin), f32)
        xpad_ref[:, 1:1 + H, 1:1 + W, :] = x_ref[...]
        # im2col patch buffer in VMEM scratch -> ONE K=9*Cin MXU matmul.
        for t, (dy, dx) in enumerate(taps):
            patch1_ref[:, t * Cin:(t + 1) * Cin] = (
                xpad_ref[:, dy:dy + Ho, dx:dx + Wo, :].reshape(M, Cin))
        patches1 = patch1_ref[...]

    y1 = jnp.dot(patches1, w1_ref[...], preferred_element_type=f32) + b1_ref[...]

    if has_ds:
        out1 = jnp.maximum(y1[:, :planes], 0.0)   # conv1 -> BN1 -> ReLU
        resid = y1[:, planes:]                    # fused 1x1 downsample -> BNd
    else:
        out1 = jnp.maximum(y1, 0.0)
        # identity residual (stride == 1, Cin == planes)
        resid = x_ref[...].reshape(M, Cin)

    # ---- conv2 (stride 1); BN2 folded ---------------------------------------
    pad2_ref[:, 0:1, :, :] = jnp.zeros((Btile, 1, Wo + 2, planes), f32)
    pad2_ref[:, Ho + 1:Ho + 2, :, :] = jnp.zeros((Btile, 1, Wo + 2, planes), f32)
    pad2_ref[:, :, 0:1, :] = jnp.zeros((Btile, Ho + 2, 1, planes), f32)
    pad2_ref[:, :, Wo + 1:Wo + 2, :] = jnp.zeros((Btile, Ho + 2, 1, planes), f32)
    pad2_ref[:, 1:1 + Ho, 1:1 + Wo, :] = out1.reshape(Btile, Ho, Wo, planes)

    for t, (dy, dx) in enumerate(taps):
        patch2_ref[:, t * planes:(t + 1) * planes] = (
            pad2_ref[:, dy:dy + Ho, dx:dx + Wo, :].reshape(M, planes))

    y2 = jnp.dot(patch2_ref[...], w2_ref[...],
                 preferred_element_type=f32) + b2_ref[...]

    # ---- residual add + final ReLU ------------------------------------------
    out = jnp.maximum(y2 + resid, 0.0)
    if lane_dense_out:
        o_ref[...] = out.reshape(Btile, Ho, Wo * planes)   # full-width rows
    else:
        o_ref[...] = out.reshape(Btile, Ho, Wo, planes)


def _choose_btile(n, m_img, target_rows=256):
    """Largest divisor of n keeping Btile*Ho*Wo <= max(target_rows, m_img)."""
    # TODO(synk): on v7x (2 TensorCores) prefer a Btile that keeps the grid
    #             length >= 2 so both cores get work.
    best = 1
    for d in range(1, n + 1):
        if n % d == 0 and d * m_img <= max(target_rows, m_img):
            best = d
    return best


def _baseblock_pallas_nhwc(x_nhwc, w1c, b1c, w2, b2, *, stride, lane_dense_out):
    N, H, W, Cin = x_nhwc.shape
    planes = w2.shape[1]
    n1 = w1c.shape[1]
    has_ds = (n1 == 2 * planes)
    if not has_ds:
        assert n1 == planes and stride == 1 and Cin == planes, (
            "identity residual requires stride == 1 and Cin == planes")
    Ho = (H - 1) // stride + 1
    Wo = (W - 1) // stride + 1
    Btile = _choose_btile(N, Ho * Wo)
    M = Btile * Ho * Wo
    grid = (N // Btile,)

    x_nhwc = x_nhwc.astype(jnp.float32)

    if stride == 1:
        x_in = x_nhwc                                    # unpadded; pad in-kernel
        x_spec = pl.BlockSpec((Btile, H, W, Cin), lambda n: (n, 0, 0, 0))
        conv1_from_patches = False
        scratch = [
            pltpu.VMEM((Btile, H + 2, W + 2, Cin), jnp.float32),     # padded in
            pltpu.VMEM((M, 9 * Cin), jnp.float32),                   # conv1 im2col
            pltpu.VMEM((Btile, Ho + 2, Wo + 2, planes), jnp.float32),
            pltpu.VMEM((M, 9 * planes), jnp.float32),                 # conv2 im2col
        ]
    else:
        # TODO(synk): stride>1 conv1 gather stays in XLA glue (static stride);
        #             everything downstream still runs in the fused kernel.
        xp = jnp.pad(x_nhwc, ((0, 0), (1, 1), (1, 1), (0, 0)))
        cols = [xp[:, dy:dy + stride * (Ho - 1) + 1:stride,
                    dx:dx + stride * (Wo - 1) + 1:stride, :]
                for dy in range(3) for dx in range(3)]
        x_in = jnp.concatenate(cols, axis=-1).reshape(N, Ho * Wo, 9 * Cin)
        x_spec = pl.BlockSpec((Btile, Ho * Wo, 9 * Cin), lambda n: (n, 0, 0))
        conv1_from_patches = True
        scratch = [
            pltpu.VMEM((Btile, Ho + 2, Wo + 2, planes), jnp.float32),
            pltpu.VMEM((M, 9 * planes), jnp.float32),
        ]

    if lane_dense_out:
        out_shape = jax.ShapeDtypeStruct((N, Ho, Wo * planes), jnp.float32)
        out_spec = pl.BlockSpec((Btile, Ho, Wo * planes), lambda n: (n, 0, 0))
    else:
        out_shape = jax.ShapeDtypeStruct((N, Ho, Wo, planes), jnp.float32)
        out_spec = pl.BlockSpec((Btile, Ho, Wo, planes), lambda n: (n, 0, 0, 0))

    kern = functools.partial(
        _block_kernel, conv1_from_patches=conv1_from_patches, has_ds=has_ds,
        lane_dense_out=lane_dense_out, Btile=Btile, H=H, W=W, Ho=Ho, Wo=Wo,
        Cin=Cin, planes=planes)

    out = pl.pallas_call(
        kern,
        out_shape=out_shape,
        grid=grid,
        in_specs=[
            x_spec,
            pl.BlockSpec((9 * Cin, n1), lambda n: (0, 0)),
            pl.BlockSpec((1, n1), lambda n: (0, 0)),
            pl.BlockSpec((9 * planes, planes), lambda n: (0, 0)),
            pl.BlockSpec((1, planes), lambda n: (0, 0)),
        ],
        out_specs=out_spec,
        scratch_shapes=scratch,
        compiler_params=pltpu.CompilerParams(
            dimension_semantics=("parallel",)),
    )(x_in, w1c, b1c, w2, b2)

    return out.reshape(N, Ho, Wo, planes)


@functools.partial(jax.jit, static_argnames=("stride", "lane_dense_out"))
def _forward_nhwc_jit(x_nhwc, params, *, stride, lane_dense_out):
    return _baseblock_pallas_nhwc(
        x_nhwc, params["w1c"], params["b1c"], params["w2"], params["b2"],
        stride=stride, lane_dense_out=lane_dense_out)


_LANE_DENSE_OK = True   # flipped off if the lane-collapse reshape fails to lower


def baseblock_sfl_forward_nhwc(x_nhwc, params, *, stride=1):
    """NHWC -> NHWC forward of one Baseblock_SFL (inference-mode BatchNorm)."""
    global _LANE_DENSE_OK
    if _LANE_DENSE_OK:
        try:
            return _forward_nhwc_jit(x_nhwc, params, stride=stride,
                                     lane_dense_out=True)
        except Exception:
            _LANE_DENSE_OK = False   # Mosaic build without lane-collapse reshape
    return _forward_nhwc_jit(x_nhwc, params, stride=stride, lane_dense_out=False)


def baseblock_sfl_forward(x_nchw, params, *, stride=1):
    """NCHW -> NCHW wrapper matching the PyTorch module's layout.  When blocks
    are chained, prefer baseblock_sfl_forward_nhwc (no per-block transposes)."""
    x = jnp.transpose(x_nchw, (0, 2, 3, 1))
    y = baseblock_sfl_forward_nhwc(x, params, stride=stride)
    return jnp.transpose(y, (0, 3, 1, 2))


# -----------------------------------------------------------------------------
# Parameter construction (mirrors the PyTorch module; deterministic).
# -----------------------------------------------------------------------------
def _conv_init(key, kh, kw, cin, cout):
    kw_, kb_ = jax.random.split(key)
    fan_in = cin * kh * kw
    bound = 1.0 / (fan_in ** 0.5)
    w = jax.random.uniform(kw_, (kh, kw, cin, cout), jnp.float32, -bound, bound)  # HWIO
    b = jax.random.uniform(kb_, (cout,), jnp.float32, -bound, bound)              # Conv2d bias
    return w, b


def _bn_init(key, c):
    k1, k2, k3, k4 = jax.random.split(key, 4)
    return {
        "gamma": jax.random.uniform(k1, (c,), jnp.float32, 0.5, 1.5),
        "beta": 0.1 * jax.random.normal(k2, (c,), jnp.float32),
        "mean": 0.1 * jax.random.normal(k3, (c,), jnp.float32),
        "var": jax.random.uniform(k4, (c,), jnp.float32, 0.5, 1.5),
    }


def make_raw_block(key, input_planes, planes, with_dim_change):
    keys = jax.random.split(key, 6)
    raw = {}
    raw["w1"], raw["cb1"] = _conv_init(keys[0], 3, 3, input_planes, planes)
    raw["bn1"] = _bn_init(keys[1], planes)
    raw["w2"], raw["cb2"] = _conv_init(keys[2], 3, 3, planes, planes)
    raw["bn2"] = _bn_init(keys[3], planes)
    if with_dim_change:
        raw["wd"], raw["cbd"] = _conv_init(keys[4], 1, 1, input_planes, planes)
        raw["bnd"] = _bn_init(keys[5], planes)
    return raw


def fold_block_params(raw):
    """Fold inference BN into the conv weights/bias; fuse dim_change into w1."""
    cin, planes = raw["w1"].shape[2], raw["w1"].shape[3]

    def fold(w, cb, bn):
        scale = bn["gamma"] / jnp.sqrt(bn["var"] + BN_EPS)
        return w * scale, (cb - bn["mean"]) * scale + bn["beta"]

    w1f, b1f = fold(raw["w1"], raw["cb1"], raw["bn1"])
    w2f, b2f = fold(raw["w2"], raw["cb2"], raw["bn2"])
    w1c = w1f.reshape(9 * cin, planes)
    b1c = b1f
    if "wd" in raw:
        wdf, bdf = fold(raw["wd"], raw["cbd"], raw["bnd"])
        # 1x1 downsample == centre tap (dy=dx=1 -> tap index 4) of the 3x3 patch.
        emb = jnp.zeros((9 * cin, planes), jnp.float32)
        emb = emb.at[4 * cin:5 * cin, :].set(wdf.reshape(cin, planes))
        w1c = jnp.concatenate([w1c, emb], axis=1)          # (9*cin, 2*planes)
        b1c = jnp.concatenate([b1f, bdf])
    return {"w1c": w1c, "b1c": b1c.reshape(1, -1),
            "w2": w2f.reshape(9 * planes, planes), "b2": b2f.reshape(1, planes)}


# -----------------------------------------------------------------------------
# Pure-JAX reference (lax.conv + explicit BN) for verification.
# -----------------------------------------------------------------------------
def _bn_ref(x, bn):
    return (x - bn["mean"]) / jnp.sqrt(bn["var"] + BN_EPS) * bn["gamma"] + bn["beta"]


def baseblock_reference(x_nchw, raw, *, stride):
    dn = ("NHWC", "HWIO", "NHWC")
    hp = lax.Precision.HIGHEST
    x = jnp.transpose(x_nchw, (0, 2, 3, 1)).astype(jnp.float32)
    out = lax.conv_general_dilated(x, raw["w1"], (stride, stride), ((1, 1), (1, 1)),
                                   dimension_numbers=dn, precision=hp) + raw["cb1"]
    out = jnp.maximum(_bn_ref(out, raw["bn1"]), 0.0)
    out = lax.conv_general_dilated(out, raw["w2"], (1, 1), ((1, 1), (1, 1)),
                                   dimension_numbers=dn, precision=hp) + raw["cb2"]
    out = _bn_ref(out, raw["bn2"])
    if "wd" in raw:
        res = lax.conv_general_dilated(x, raw["wd"], (stride, stride), ((0, 0), (0, 0)),
                                       dimension_numbers=dn, precision=hp) + raw["cbd"]
        res = _bn_ref(res, raw["bnd"])
    else:
        res = x
    return jnp.transpose(jnp.maximum(out + res, 0.0), (0, 3, 1, 2))


# -----------------------------------------------------------------------------
if __name__ == "__main__":
    key = jax.random.PRNGKey(0)
    kx, kb1, kb2 = jax.random.split(key, 3)

    # Block A: 16 -> 32 channels, stride 2, dim_change = 1x1 conv + BN.
    rawA = make_raw_block(kb1, 16, 32, with_dim_change=True)
    pA = fold_block_params(rawA)
    # Block B: 32 -> 32 channels, stride 1, identity residual (dim_change=None).
    rawB = make_raw_block(kb2, 32, 32, with_dim_change=False)
    pB = fold_block_params(rawB)

    x_nchw = jax.random.normal(kx, (2, 16, 16, 16), jnp.float32)     # NCHW

    # Chain the blocks in NHWC; transpose only at the network boundary.
    x_nhwc = jnp.transpose(x_nchw, (0, 2, 3, 1))
    yA = baseblock_sfl_forward_nhwc(x_nhwc, pA, stride=2)
    yB = baseblock_sfl_forward_nhwc(yA, pB, stride=1)
    yB = jax.block_until_ready(yB)
    yA_nchw = jnp.transpose(yA, (0, 3, 1, 2))
    yB_nchw = jnp.transpose(yB, (0, 3, 1, 2))
    assert yA_nchw.shape == (2, 32, 8, 8), yA_nchw.shape
    assert yB_nchw.shape == (2, 32, 8, 8), yB_nchw.shape

    rA = baseblock_reference(x_nchw, rawA, stride=2)
    rB = baseblock_reference(rA, rawB, stride=1)
    errA = float(jnp.max(jnp.abs(yA_nchw - rA)))
    errB = float(jnp.max(jnp.abs(yB_nchw - rB)))
    assert jnp.allclose(yA_nchw, rA, atol=1e-2, rtol=1e-2), errA
    assert jnp.allclose(yB_nchw, rB, atol=1e-2, rtol=1e-2), errB

    # Also exercise the module-equivalent NCHW wrapper once.
    yA2 = jax.block_until_ready(baseblock_sfl_forward(x_nchw, pA, stride=2))
    assert jnp.allclose(yA2, rA, atol=1e-2, rtol=1e-2)

    print("KERNEL_OK")
</pallas_src>

<mosaic_0001>
module attributes {stable_mosaic.version = 11 : i64} {
  func.func @_block_kernel(%arg0: i32, %arg1: memref<2x64x144xf32, #tpu.memory_space<vmem>>, %arg2: memref<144x64xf32, #tpu.memory_space<vmem>>, %arg3: memref<1x64xf32, #tpu.memory_space<vmem>>, %arg4: memref<288x32xf32, #tpu.memory_space<vmem>>, %arg5: memref<1x32xf32, #tpu.memory_space<vmem>>, %arg6: memref<2x8x256xf32, #tpu.memory_space<vmem>>, %arg7: memref<2x10x10x32xf32, #tpu.memory_space<vmem>>, %arg8: memref<128x288xf32, #tpu.memory_space<vmem>>) attributes {dimension_semantics = [#tpu.dimension_semantics<parallel>], iteration_bounds = array<i64: 1>, scalar_prefetch = 0 : i64, scratch_operands = 2 : i64, tpu.core_type = #tpu.core_type<tc>, window_params = [{transform_indices = @transform_0, window_bounds = array<i64: 2, 64, 144>}, {pipeline_mode = #tpu.pipeline_mode<synchronous>, transform_indices = @transform_1, window_bounds = array<i64: 144, 64>}, {pipeline_mode = #tpu.pipeline_mode<synchronous>, transform_indices = @transform_2, window_bounds = array<i64: 1, 64>}, {pipeline_mode = #tpu.pipeline_mode<synchronous>, transform_indices = @transform_3, window_bounds = array<i64: 288, 32>}, {pipeline_mode = #tpu.pipeline_mode<synchronous>, transform_indices = @transform_4, window_bounds = array<i64: 1, 32>}, {transform_indices = @transform_5, window_bounds = array<i64: 2, 8, 256>}]} {
    %c0 = arith.constant 0 : index
    %c0_0 = arith.constant 0 : index
    %c0_1 = arith.constant 0 : index
    %0 = vector.load %arg1[%c0, %c0_0, %c0_1] : memref<2x64x144xf32, #tpu.memory_space<vmem>>, vector<2x64x144xf32>
    %1 = vector.shape_cast %0 : vector<2x64x144xf32> to vector<128x144xf32>
    %c0_2 = arith.constant 0 : index
    %c0_3 = arith.constant 0 : index
    %2 = vector.load %arg2[%c0_2, %c0_3] : memref<144x64xf32, #tpu.memory_space<vmem>>, vector<144x64xf32>
    %cst = arith.constant dense<0.000000e+00> : vector<128x64xf32>
    %3 = tpu.matmul %1, %2, %cst {dimension_numbers = #tpu.dot_dimension_numbers<[1], [0], [0], [1], [0, 0, 1, 1], [], []>} : vector<128x144xf32>, vector<144x64xf32>, vector<128x64xf32> -> vector<128x64xf32>
    %c0_4 = arith.constant 0 : index
    %c0_5 = arith.constant 0 : index
    %4 = vector.load %arg3[%c0_4, %c0_5] : memref<1x64xf32, #tpu.memory_space<vmem>>, vector<1x64xf32>
    %5 = vector.broadcast %4 : vector<1x64xf32> to vector<128x64xf32>
    %6 = arith.addf %3, %5 : vector<128x64xf32>
    %7 = vector.extract_strided_slice %6 {offsets = [0, 0], sizes = [128, 32], strides = [1, 1]} : vector<128x64xf32> to vector<128x32xf32>
    %cst_6 = arith.constant 0.000000e+00 : f32
    %8 = vector.broadcast %cst_6 : f32 to vector<128x32xf32>
    %9 = arith.maximumf %7, %8 : vector<128x32xf32>
    %10 = vector.extract_strided_slice %6 {offsets = [0, 32], sizes = [128, 32], strides = [1, 1]} : vector<128x64xf32> to vector<128x32xf32>
    %cst_7 = arith.constant 0.000000e+00 : f32
    %11 = vector.broadcast %cst_7 : f32 to vector<2x1x10x32xf32>
    %c0_8 = arith.constant 0 : index
    %c0_9 = arith.constant 0 : index
    %c0_10 = arith.constant 0 : index
    %c0_11 = arith.constant 0 : index
    %12 = vector.load %arg7[%c0_8, %c0_9, %c0_10, %c0_11] : memref<2x10x10x32xf32, #tpu.memory_space<vmem>>, vector<2x1x10x32xf32>
    tpu.vector_store %arg7[%c0_8, %c0_9, %c0_10, %c0_11], %11 {strides = array<i32>} : memref<2x10x10x32xf32, #tpu.memory_space<vmem>>, vector<2x1x10x32xf32>,
    %cst_12 = arith.constant 0.000000e+00 : f32
    %13 = vector.broadcast %cst_12 : f32 to vector<2x1x10x32xf32>
    %c0_13 = arith.constant 0 : index
    %c9 = arith.constant 9 : index
    %c0_14 = arith.constant 0 : index
    %c0_15 = arith.constant 0 : index
    %14 = vector.load %arg7[%c0_13, %c9, %c0_14, %c0_15] : memref<2x10x10x32xf32, #tpu.memory_space<vmem>>, vector<2x1x10x32xf32>
    tpu.vector_store %arg7[%c0_13, %c9, %c0_14, %c0_15], %13 {strides = array<i32>} : memref<2x10x10x32xf32, #tpu.memory_space<vmem>>, vector<2x1x10x32xf32>,
    %cst_16 = arith.constant 0.000000e+00 : f32
    %15 = vector.broadcast %cst_16 : f32 to vector<2x10x1x32xf32>
    %c0_17 = arith.constant 0 : index
    %c0_18 = arith.constant 0 : index
    %c0_19 = arith.constant 0 : index
    %c0_20 = arith.constant 0 : index
    %16 = vector.load %arg7[%c0_17, %c0_18, %c0_19, %c0_20] : memref<2x10x10x32xf32, #tpu.memory_space<vmem>>, vector<2x10x1x32xf32>
    tpu.vector_store %arg7[%c0_17, %c0_18, %c0_19, %c0_20], %15 {strides = array<i32>} : memref<2x10x10x32xf32, #tpu.memory_space<vmem>>, vector<2x10x1x32xf32>,
    %cst_21 = arith.constant 0.000000e+00 : f32
    %17 = vector.broadcast %cst_21 : f32 to vector<2x10x1x32xf32>
    %c0_22 = arith.constant 0 : index
    %c0_23 = arith.constant 0 : index
    %c9_24 = arith.constant 9 : index
    %c0_25 = arith.constant 0 : index
    %18 = vector.load %arg7[%c0_22, %c0_23, %c9_24, %c0_25] : memref<2x10x10x32xf32, #tpu.memory_space<vmem>>, vector<2x10x1x32xf32>
    tpu.vector_store %arg7[%c0_22, %c0_23, %c9_24, %c0_25], %17 {strides = array<i32>} : memref<2x10x10x32xf32, #tpu.memory_space<vmem>>, vector<2x10x1x32xf32>,
    %19 = vector.shape_cast %9 : vector<128x32xf32> to vector<2x8x8x32xf32>
    %c0_26 = arith.constant 0 : index
    %c1 = arith.constant 1 : index
    %c1_27 = arith.constant 1 : index
    %c0_28 = arith.constant 0 : index
    %20 = vector.load %arg7[%c0_26, %c1, %c1_27, %c0_28] : memref<2x10x10x32xf32, #tpu.memory_space<vmem>>, vector<2x8x8x32xf32>
    tpu.vector_store %arg7[%c0_26, %c1, %c1_27, %c0_28], %19 {strides = array<i32>} : memref<2x10x10x32xf32, #tpu.memory_space<vmem>>, vector<2x8x8x32xf32>,
    %c0_29 = arith.constant 0 : index
    %c0_30 = arith.constant 0 : index
    %c0_31 = arith.constant 0 : index
    %c0_32 = arith.constant 0 : index
    %21 = vector.load %arg7[%c0_29, %c0_30, %c0_31, %c0_32] : memref<2x10x10x32xf32, #tpu.memory_space<vmem>>, vector<2x8x8x32xf32>
    %22 = vector.shape_cast %21 : vector<2x8x8x32xf32> to vector<128x32xf32>
    %c0_33 = arith.constant 0 : index
    %c0_34 = arith.constant 0 : index
    %23 = vector.load %arg8[%c0_33, %c0_34] : memref<128x288xf32, #tpu.memory_space<vmem>>, vector<128x32xf32>
    tpu.vector_store %arg8[%c0_33, %c0_34], %22 {strides = array<i32>} : memref<128x288xf32, #tpu.memory_space<vmem>>, vector<128x32xf32>,
    %c0_35 = arith.constant 0 : index
    %c0_36 = arith.constant 0 : index
    %c1_37 = arith.constant 1 : index
    %c0_38 = arith.constant 0 : index
    %24 = vector.load %arg7[%c0_35, %c0_36, %c1_37, %c0_38] : memref<2x10x10x32xf32, #tpu.memory_space<vmem>>, vector<2x8x8x32xf32>
    %25 = vector.shape_cast %24 : vector<2x8x8x32xf32> to vector<128x32xf32>
    %c0_39 = arith.constant 0 : index
    %c32 = arith.constant 32 : index
    %26 = vector.load %arg8[%c0_39, %c32] : memref<128x288xf32, #tpu.memory_space<vmem>>, vector<128x32xf32>
    tpu.vector_store %arg8[%c0_39, %c32], %25 {strides = array<i32>} : memref<128x288xf32, #tpu.memory_space<vmem>>, vector<128x32xf32>,
    %c0_40 = arith.constant 0 : index
    %c0_41 = arith.constant 0 : index
    %c2 = arith.constant 2 : index
    %c0_42 = arith.constant 0 : index
    %27 = vector.load %arg7[%c0_40, %c0_41, %c2, %c0_42] : memref<2x10x10x32xf32, #tpu.memory_space<vmem>>, vector<2x8x8x32xf32>
    %28 = vector.shape_cast %27 : vector<2x8x8x32xf32> to vector<128x32xf32>
    %c0_43 = arith.constant 0 : index
    %c64 = arith.constant 64 : index
    %29 = vector.load %arg8[%c0_43, %c64] : memref<128x288xf32, #tpu.memory_space<vmem>>, vector<128x32xf32>
    tpu.vector_store %arg8[%c0_43, %c64], %28 {strides = array<i32>} : memref<128x288xf32, #tpu.memory_space<vmem>>, vector<128x32xf32>,
    %c0_44 = arith.constant 0 : index
    %c1_45 = arith.constant 1 : index
    %c0_46 = arith.constant 0 : index
    %c0_47 = arith.constant 0 : index
    %30 = vector.load %arg7[%c0_44, %c1_45, %c0_46, %c0_47] : memref<2x10x10x32xf32, #tpu.memory_space<vmem>>, vector<2x8x8x32xf32>
    %31 = vector.shape_cast %30 : vector<2x8x8x32xf32> to vector<128x32xf32>
    %c0_48 = arith.constant 0 : index
    %c96 = arith.constant 96 : index
    %32 = vector.load %arg8[%c0_48, %c96] : memref<128x288xf32, #tpu.memory_space<vmem>>, vector<128x32xf32>
    tpu.vector_store %arg8[%c0_48, %c96], %31 {strides = array<i32>} : memref<128x288xf32, #tpu.memory_space<vmem>>, vector<128x32xf32>,
    %c0_49 = arith.constant 0 : index
    %c1_50 = arith.constant 1 : index
    %c1_51 = arith.constant 1 : index
    %c0_52 = arith.constant 0 : index
    %33 = vector.load %arg7[%c0_49, %c1_50, %c1_51, %c0_52] : memref<2x10x10x32xf32, #tpu.memory_space<vmem>>, vector<2x8x8x32xf32>
    %34 = vector.shape_cast %33 : vector<2x8x8x32xf32> to vector<128x32xf32>
    %c0_53 = arith.constant 0 : index
    %c128 = arith.constant 128 : index
    %35 = vector.load %arg8[%c0_53, %c128] : memref<128x288xf32, #tpu.memory_space<vmem>>, vector<128x32xf32>
    tpu.vector_store %arg8[%c0_53, %c128], %34 {strides = array<i32>} : memref<128x288xf32, #tpu.memory_space<vmem>>, vector<128x32xf32>,
    %c0_54 = arith.constant 0 : index
    %c1_55 = arith.constant 1 : index
    %c2_56 = arith.constant 2 : index
    %c0_57 = arith.constant 0 : index
    %36 = vector.load %arg7[%c0_54, %c1_55, %c2_56, %c0_57] : memref<2x10x10x32xf32, #tpu.memory_space<vmem>>, vector<2x8x8x32xf32>
    %37 = vector.shape_cast %36 : vector<2x8x8x32xf32> to vector<128x32xf32>
    %c0_58 = arith.constant 0 : index
    %c160 = arith.constant 160 : index
    %38 = vector.load %arg8[%c0_58, %c160] : memref<128x288xf32, #tpu.memory_space<vmem>>, vector<128x32xf32>
    tpu.vector_store %arg8[%c0_58, %c160], %37 {strides = array<i32>} : memref<128x288xf32, #tpu.memory_space<vmem>>, vector<128x32xf32>,
    %c0_59 = arith.constant 0 : index
    %c2_60 = arith.constant 2 : index
    %c0_61 = arith.constant 0 : index
    %c0_62 = arith.constant 0 : index
    %39 = vector.load %arg7[%c0_59, %c2_60, %c0_61, %c0_62] : memref<2x10x10x32xf32, #tpu.memory_space<vmem>>, vector<2x8x8x32xf32>
    %40 = vector.shape_cast %39 : vector<2x8x8x32xf32> to vector<128x32xf32>
    %c0_63 = arith.constant 0 : index
    %c192 = arith.constant 192 : index
    %41 = vector.load %arg8[%c0_63, %c192] : memref<128x288xf32, #tpu.memory_space<vmem>>, vector<128x32xf32>
    tpu.vector_store %arg8[%c0_63, %c192], %40 {strides = array<i32>} : memref<128x288xf32, #tpu.memory_space<vmem>>, vector<128x32xf32>,
    %c0_64 = arith.constant 0 : index
    %c2_65 = arith.constant 2 : index
    %c1_66 = arith.constant 1 : index
    %c0_67 = arith.constant 0 : index
    %42 = vector.load %arg7[%c0_64, %c2_65, %c1_66, %c0_67] : memref<2x10x10x32xf32, #tpu.memory_space<vmem>>, vector<2x8x8x32xf32>
    %43 = vector.shape_cast %42 : vector<2x8x8x32xf32> to vector<128x32xf32>
    %c0_68 = arith.constant 0 : index
    %c224 = arith.constant 224 : index
    %44 = vector.load %arg8[%c0_68, %c224] : memref<128x288xf32, #tpu.memory_space<vmem>>, vector<128x32xf32>
    tpu.vector_store %arg8[%c0_68, %c224], %43 {strides = array<i32>} : memref<128x288xf32, #tpu.memory_space<vmem>>, vector<128x32xf32>,
    %c0_69 = arith.constant 0 : index
    %c2_70 = arith.constant 2 : index
    %c2_71 = arith.constant 2 : index
    %c0_72 = arith.constant 0 : index
    %45 = vector.load %arg7[%c0_69, %c2_70, %c2_71, %c0_72] : memref<2x10x10x32xf32, #tpu.memory_space<vmem>>, vector<2x8x8x32xf32>
    %46 = vector.shape_cast %45 : vector<2x8x8x32xf32> to vector<128x32xf32>
    %c0_73 = arith.constant 0 : index
    %c256 = arith.constant 256 : index
    %47 = vector.load %arg8[%c0_73, %c256] : memref<128x288xf32, #tpu.memory_space<vmem>>, vector<128x32xf32>
    tpu.vector_store %arg8[%c0_73, %c256], %46 {strides = array<i32>} : memref<128x288xf32, #tpu.memory_space<vmem>>, vector<128x32xf32>,
    %c0_74 = arith.constant 0 : index
    %c0_75 = arith.constant 0 : index
    %48 = vector.load %arg8[%c0_74, %c0_75] : memref<128x288xf32, #tpu.memory_space<vmem>>, vector<128x288xf32>
    %c0_76 = arith.constant 0 : index
    %c0_77 = arith.constant 0 : index
    %49 = vector.load %arg4[%c0_76, %c0_77] : memref<288x32xf32, #tpu.memory_space<vmem>>, vector<288x32xf32>
    %cst_78 = arith.constant dense<0.000000e+00> : vector<128x32xf32>
    %50 = tpu.matmul %48, %49, %cst_78 {dimension_numbers = #tpu.dot_dimension_numbers<[1], [0], [0], [1], [0, 0, 1, 1], [], []>} : vector<128x288xf32>, vector<288x32xf32>, vector<128x32xf32> -> vector<128x32xf32>
    %c0_79 = arith.constant 0 : index
    %c0_80 = arith.constant 0 : index
    %51 = vector.load %arg5[%c0_79, %c0_80] : memref<1x32xf32, #tpu.memory_space<vmem>>, vector<1x32xf32>
    %52 = vector.broadcast %51 : vector<1x32xf32> to vector<128x32xf32>
    %53 = arith.addf %50, %52 : vector<128x32xf32>
    %54 = arith.addf %53, %10 : vector<128x32xf32>
    %cst_81 = arith.constant 0.000000e+00 : f32
    %55 = vector.broadcast %cst_81 : f32 to vector<128x32xf32>
    %56 = arith.maximumf %54, %55 : vector<128x32xf32>
    %57 = vector.shape_cast %56 : vector<128x32xf32> to vector<2x8x256xf32>
    %c0_82 = arith.constant 0 : index
    %c0_83 = arith.constant 0 : index
    %c0_84 = arith.constant 0 : index
    %58 = vector.load %arg6[%c0_82, %c0_83, %c0_84] : memref<2x8x256xf32, #tpu.memory_space<vmem>>, vector<2x8x256xf32>
    tpu.vector_store %arg6[%c0_82, %c0_83, %c0_84], %57 {strides = array<i32>} : memref<2x8x256xf32, #tpu.memory_space<vmem>>, vector<2x8x256xf32>,
    return
  }
  func.func @transform_0(%arg0: i32) -> (i32, i32, i32) {
    %c0_i32 = arith.constant 0 : i32
    %c0_i32_0 = arith.constant 0 : i32
    %c0_i32_1 = arith.constant 0 : i32
    return %arg0, %c0_i32, %c0_i32_0 : i32, i32, i32
  }
  func.func @transform_1(%arg0: i32) -> (i32, i32) {
    %c0_i32 = arith.constant 0 : i32
    %c0_i32_0 = arith.constant 0 : i32
    %c0_i32_1 = arith.constant 0 : i32
    return %c0_i32, %c0_i32_0 : i32, i32
  }
  func.func @transform_2(%arg0: i32) -> (i32, i32) {
    %c0_i32 = arith.constant 0 : i32
    %c0_i32_0 = arith.constant 0 : i32
    %c0_i32_1 = arith.constant 0 : i32
    return %c0_i32, %c0_i32_0 : i32, i32
  }
  func.func @transform_3(%arg0: i32) -> (i32, i32) {
    %c0_i32 = arith.constant 0 : i32
    %c0_i32_0 = arith.constant 0 : i32
    %c0_i32_1 = arith.constant 0 : i32
    return %c0_i32, %c0_i32_0 : i32, i32
  }
  func.func @transform_4(%arg0: i32) -> (i32, i32) {
    %c0_i32 = arith.constant 0 : i32
    %c0_i32_0 = arith.constant 0 : i32
    %c0_i32_1 = arith.constant 0 : i32
    return %c0_i32, %c0_i32_0 : i32, i32
  }
  func.func @transform_5(%arg0: i32) -> (i32, i32, i32) {
    %c0_i32 = arith.constant 0 : i32
    %c0_i32_0 = arith.constant 0 : i32
    %c0_i32_1 = arith.constant 0 : i32
    return %arg0, %c0_i32, %c0_i32_0 : i32, i32, i32
  }
}

module attributes {stable_mosaic.version = 11 : i64} {
  func.func @_block_kernel(%arg0: i32, %arg1: memref<2x64x144xf32, #tpu.memory_space<vmem>>, %arg2: memref<144x64xf32, #tpu.memory_space<vmem>>, %arg3: memref<1x64xf32, #tpu.memory_space<vmem>>, %arg4: memref<288x32xf32, #tpu.memory_space<vmem>>, %arg5: memref<1x32xf32, #tpu.memory_space<vmem>>, %arg6: memref<2x8x8x32xf32, #tpu.memory_space<vmem>>, %arg7: memref<2x10x10x32xf32, #tpu.memory_space<vmem>>, %arg8: memref<128x288xf32, #tpu.memory_space<vmem>>) attributes {dimension_semantics = [#tpu.dimension_semantics<parallel>], iteration_bounds = array<i64: 1>, scalar_prefetch = 0 : i64, scratch_operands = 2 : i64, tpu.core_type = #tpu.core_type<tc>, window_params = [{transform_indices = @transform_0, window_bounds = array<i64: 2, 64, 144>}, {pipeline_mode = #tpu.pipeline_mode<synchronous>, transform_indices = @transform_1, window_bounds = array<i64: 144, 64>}, {pipeline_mode = #tpu.pipeline_mode<synchronous>, transform_indices = @transform_2, window_bounds = array<i64: 1, 64>}, {pipeline_mode = #tpu.pipeline_mode<synchronous>, transform_indices = @transform_3, window_bounds = array<i64: 288, 32>}, {pipeline_mode = #tpu.pipeline_mode<synchronous>, transform_indices = @transform_4, window_bounds = array<i64: 1, 32>}, {transform_indices = @transform_5, window_bounds = array<i64: 2, 8, 8, 32>}]} {
    %c0 = arith.constant 0 : index
    %c0_0 = arith.constant 0 : index
    %c0_1 = arith.constant 0 : index
    %0 = vector.load %arg1[%c0, %c0_0, %c0_1] : memref<2x64x144xf32, #tpu.memory_space<vmem>>, vector<2x64x144xf32>
    %1 = vector.shape_cast %0 : vector<2x64x144xf32> to vector<128x144xf32>
    %c0_2 = arith.constant 0 : index
    %c0_3 = arith.constant 0 : index
    %2 = vector.load %arg2[%c0_2, %c0_3] : memref<144x64xf32, #tpu.memory_space<vmem>>, vector<144x64xf32>
    %cst = arith.constant dense<0.000000e+00> : vector<128x64xf32>
    %3 = tpu.matmul %1, %2, %cst {dimension_numbers = #tpu.dot_dimension_numbers<[1], [0], [0], [1], [0, 0, 1, 1], [], []>} : vector<128x144xf32>, vector<144x64xf32>, vector<128x64xf32> -> vector<128x64xf32>
    %c0_4 = arith.constant 0 : index
    %c0_5 = arith.constant 0 : index
    %4 = vector.load %arg3[%c0_4, %c0_5] : memref<1x64xf32, #tpu.memory_space<vmem>>, vector<1x64xf32>
    %5 = vector.broadcast %4 : vector<1x64xf32> to vector<128x64xf32>
    %6 = arith.addf %3, %5 : vector<128x64xf32>
    %7 = vector.extract_strided_slice %6 {offsets = [0, 0], sizes = [128, 32], strides = [1, 1]} : vector<128x64xf32> to vector<128x32xf32>
    %cst_6 = arith.constant 0.000000e+00 : f32
    %8 = vector.broadcast %cst_6 : f32 to vector<128x32xf32>
    %9 = arith.maximumf %7, %8 : vector<128x32xf32>
    %10 = vector.extract_strided_slice %6 {offsets = [0, 32], sizes = [128, 32], strides = [1, 1]} : vector<128x64xf32> to vector<128x32xf32>
    %cst_7 = arith.constant 0.000000e+00 : f32
    %11 = vector.broadcast %cst_7 : f32 to vector<2x1x10x32xf32>
    %c0_8 = arith.constant 0 : index
    %c0_9 = arith.constant 0 : index
    %c0_10 = arith.constant 0 : index
    %c0_11 = arith.constant 0 : index
    %12 = vector.load %arg7[%c0_8, %c0_9, %c0_10, %c0_11] : memref<2x10x10x32xf32, #tpu.memory_space<vmem>>, vector<2x1x10x32xf32>
    tpu.vector_store %arg7[%c0_8, %c0_9, %c0_10, %c0_11], %11 {strides = array<i32>} : memref<2x10x10x32xf32, #tpu.memory_space<vmem>>, vector<2x1x10x32xf32>,
    %cst_12 = arith.constant 0.000000e+00 : f32
    %13 = vector.broadcast %cst_12 : f32 to vector<2x1x10x32xf32>
    %c0_13 = arith.constant 0 : index
    %c9 = arith.constant 9 : index
    %c0_14 = arith.constant 0 : index
    %c0_15 = arith.constant 0 : index
    %14 = vector.load %arg7[%c0_13, %c9, %c0_14, %c0_15] : memref<2x10x10x32xf32, #tpu.memory_space<vmem>>, vector<2x1x10x32xf32>
    tpu.vector_store %arg7[%c0_13, %c9, %c0_14, %c0_15], %13 {strides = array<i32>} : memref<2x10x10x32xf32, #tpu.memory_space<vmem>>, vector<2x1x10x32xf32>,
    %cst_16 = arith.constant 0.000000e+00 : f32
    %15 = vector.broadcast %cst_16 : f32 to vector<2x10x1x32xf32>
    %c0_17 = arith.constant 0 : index
    %c0_18 = arith.constant 0 : index
    %c0_19 = arith.constant 0 : index
    %c0_20 = arith.constant 0 : index
    %16 = vector.load %arg7[%c0_17, %c0_18, %c0_19, %c0_20] : memref<2x10x10x32xf32, #tpu.memory_space<vmem>>, vector<2x10x1x32xf32>
    tpu.vector_store %arg7[%c0_17, %c0_18, %c0_19, %c0_20], %15 {strides = array<i32>} : memref<2x10x10x32xf32, #tpu.memory_space<vmem>>, vector<2x10x1x32xf32>,
    %cst_21 = arith.constant 0.000000e+00 : f32
    %17 = vector.broadcast %cst_21 : f32 to vector<2x10x1x32xf32>
    %c0_22 = arith.constant 0 : index
    %c0_23 = arith.constant 0 : index
    %c9_24 = arith.constant 9 : index
    %c0_25 = arith.constant 0 : index
    %18 = vector.load %arg7[%c0_22, %c0_23, %c9_24, %c0_25] : memref<2x10x10x32xf32, #tpu.memory_space<vmem>>, vector<2x10x1x32xf32>
    tpu.vector_store %arg7[%c0_22, %c0_23, %c9_24, %c0_25], %17 {strides = array<i32>} : memref<2x10x10x32xf32, #tpu.memory_space<vmem>>, vector<2x10x1x32xf32>,
    %19 = vector.shape_cast %9 : vector<128x32xf32> to vector<2x8x8x32xf32>
    %c0_26 = arith.constant 0 : index
    %c1 = arith.constant 1 : index
    %c1_27 = arith.constant 1 : index
    %c0_28 = arith.constant 0 : index
    %20 = vector.load %arg7[%c0_26, %c1, %c1_27, %c0_28] : memref<2x10x10x32xf32, #tpu.memory_space<vmem>>, vector<2x8x8x32xf32>
    tpu.vector_store %arg7[%c0_26, %c1, %c1_27, %c0_28], %19 {strides = array<i32>} : memref<2x10x10x32xf32, #tpu.memory_space<vmem>>, vector<2x8x8x32xf32>,
    %c0_29 = arith.constant 0 : index
    %c0_30 = arith.constant 0 : index
    %c0_31 = arith.constant 0 : index
    %c0_32 = arith.constant 0 : index
    %21 = vector.load %arg7[%c0_29, %c0_30, %c0_31, %c0_32] : memref<2x10x10x32xf32, #tpu.memory_space<vmem>>, vector<2x8x8x32xf32>
    %22 = vector.shape_cast %21 : vector<2x8x8x32xf32> to vector<128x32xf32>
    %c0_33 = arith.constant 0 : index
    %c0_34 = arith.constant 0 : index
    %23 = vector.load %arg8[%c0_33, %c0_34] : memref<128x288xf32, #tpu.memory_space<vmem>>, vector<128x32xf32>
    tpu.vector_store %arg8[%c0_33, %c0_34], %22 {strides = array<i32>} : memref<128x288xf32, #tpu.memory_space<vmem>>, vector<128x32xf32>,
    %c0_35 = arith.constant 0 : index
    %c0_36 = arith.constant 0 : index
    %c1_37 = arith.constant 1 : index
    %c0_38 = arith.constant 0 : index
    %24 = vector.load %arg7[%c0_35, %c0_36, %c1_37, %c0_38] : memref<2x10x10x32xf32, #tpu.memory_space<vmem>>, vector<2x8x8x32xf32>
    %25 = vector.shape_cast %24 : vector<2x8x8x32xf32> to vector<128x32xf32>
    %c0_39 = arith.constant 0 : index
    %c32 = arith.constant 32 : index
    %26 = vector.load %arg8[%c0_39, %c32] : memref<128x288xf32, #tpu.memory_space<vmem>>, vector<128x32xf32>
    tpu.vector_store %arg8[%c0_39, %c32], %25 {strides = array<i32>} : memref<128x288xf32, #tpu.memory_space<vmem>>, vector<128x32xf32>,
    %c0_40 = arith.constant 0 : index
    %c0_41 = arith.constant 0 : index
    %c2 = arith.constant 2 : index
    %c0_42 = arith.constant 0 : index
    %27 = vector.load %arg7[%c0_40, %c0_41, %c2, %c0_42] : memref<2x10x10x32xf32, #tpu.memory_space<vmem>>, vector<2x8x8x32xf32>
    %28 = vector.shape_cast %27 : vector<2x8x8x32xf32> to vector<128x32xf32>
    %c0_43 = arith.constant 0 : index
    %c64 = arith.constant 64 : index
    %29 = vector.load %arg8[%c0_43, %c64] : memref<128x288xf32, #tpu.memory_space<vmem>>, vector<128x32xf32>
    tpu.vector_store %arg8[%c0_43, %c64], %28 {strides = array<i32>} : memref<128x288xf32, #tpu.memory_space<vmem>>, vector<128x32xf32>,
    %c0_44 = arith.constant 0 : index
    %c1_45 = arith.constant 1 : index
    %c0_46 = arith.constant 0 : index
    %c0_47 = arith.constant 0 : index
    %30 = vector.load %arg7[%c0_44, %c1_45, %c0_46, %c0_47] : memref<2x10x10x32xf32, #tpu.memory_space<vmem>>, vector<2x8x8x32xf32>
    %31 = vector.shape_cast %30 : vector<2x8x8x32xf32> to vector<128x32xf32>
    %c0_48 = arith.constant 0 : index
    %c96 = arith.constant 96 : index
    %32 = vector.load %arg8[%c0_48, %c96] : memref<128x288xf32, #tpu.memory_space<vmem>>, vector<128x32xf32>
    tpu.vector_store %arg8[%c0_48, %c96], %31 {strides = array<i32>} : memref<128x288xf32, #tpu.memory_space<vmem>>, vector<128x32xf32>,
    %c0_49 = arith.constant 0 : index
    %c1_50 = arith.constant 1 : index
    %c1_51 = arith.constant 1 : index
    %c0_52 = arith.constant 0 : index
    %33 = vector.load %arg7[%c0_49, %c1_50, %c1_51, %c0_52] : memref<2x10x10x32xf32, #tpu.memory_space<vmem>>, vector<2x8x8x32xf32>
    %34 = vector.shape_cast %33 : vector<2x8x8x32xf32> to vector<128x32xf32>
    %c0_53 = arith.constant 0 : index
    %c128 = arith.constant 128 : index
    %35 = vector.load %arg8[%c0_53, %c128] : memref<128x288xf32, #tpu.memory_space<vmem>>, vector<128x32xf32>
    tpu.vector_store %arg8[%c0_53, %c128], %34 {strides = array<i32>} : memref<128x288xf32, #tpu.memory_space<vmem>>, vector<128x32xf32>,
    %c0_54 = arith.constant 0 : index
    %c1_55 = arith.constant 1 : index
    %c2_56 = arith.constant 2 : index
    %c0_57 = arith.constant 0 : index
    %36 = vector.load %arg7[%c0_54, %c1_55, %c2_56, %c0_57] : memref<2x10x10x32xf32, #tpu.memory_space<vmem>>, vector<2x8x8x32xf32>
    %37 = vector.shape_cast %36 : vector<2x8x8x32xf32> to vector<128x32xf32>
    %c0_58 = arith.constant 0 : index
    %c160 = arith.constant 160 : index
    %38 = vector.load %arg8[%c0_58, %c160] : memref<128x288xf32, #tpu.memory_space<vmem>>, vector<128x32xf32>
    tpu.vector_store %arg8[%c0_58, %c160], %37 {strides = array<i32>} : memref<128x288xf32, #tpu.memory_space<vmem>>, vector<128x32xf32>,
    %c0_59 = arith.constant 0 : index
    %c2_60 = arith.constant 2 : index
    %c0_61 = arith.constant 0 : index
    %c0_62 = arith.constant 0 : index
    %39 = vector.load %arg7[%c0_59, %c2_60, %c0_61, %c0_62] : memref<2x10x10x32xf32, #tpu.memory_space<vmem>>, vector<2x8x8x32xf32>
    %40 = vector.shape_cast %39 : vector<2x8x8x32xf32> to vector<128x32xf32>
    %c0_63 = arith.constant 0 : index
    %c192 = arith.constant 192 : index
    %41 = vector.load %arg8[%c0_63, %c192] : memref<128x288xf32, #tpu.memory_space<vmem>>, vector<128x32xf32>
    tpu.vector_store %arg8[%c0_63, %c192], %40 {strides = array<i32>} : memref<128x288xf32, #tpu.memory_space<vmem>>, vector<128x32xf32>,
    %c0_64 = arith.constant 0 : index
    %c2_65 = arith.constant 2 : index
    %c1_66 = arith.constant 1 : index
    %c0_67 = arith.constant 0 : index
    %42 = vector.load %arg7[%c0_64, %c2_65, %c1_66, %c0_67] : memref<2x10x10x32xf32, #tpu.memory_space<vmem>>, vector<2x8x8x32xf32>
    %43 = vector.shape_cast %42 : vector<2x8x8x32xf32> to vector<128x32xf32>
    %c0_68 = arith.constant 0 : index
    %c224 = arith.constant 224 : index
    %44 = vector.load %arg8[%c0_68, %c224] : memref<128x288xf32, #tpu.memory_space<vmem>>, vector<128x32xf32>
    tpu.vector_store %arg8[%c0_68, %c224], %43 {strides = array<i32>} : memref<128x288xf32, #tpu.memory_space<vmem>>, vector<128x32xf32>,
    %c0_69 = arith.constant 0 : index
    %c2_70 = arith.constant 2 : index
    %c2_71 = arith.constant 2 : index
    %c0_72 = arith.constant 0 : index
    %45 = vector.load %arg7[%c0_69, %c2_70, %c2_71, %c0_72] : memref<2x10x10x32xf32, #tpu.memory_space<vmem>>, vector<2x8x8x32xf32>
    %46 = vector.shape_cast %45 : vector<2x8x8x32xf32> to vector<128x32xf32>
    %c0_73 = arith.constant 0 : index
    %c256 = arith.constant 256 : index
    %47 = vector.load %arg8[%c0_73, %c256] : memref<128x288xf32, #tpu.memory_space<vmem>>, vector<128x32xf32>
    tpu.vector_store %arg8[%c0_73, %c256], %46 {strides = array<i32>} : memref<128x288xf32, #tpu.memory_space<vmem>>, vector<128x32xf32>,
    %c0_74 = arith.constant 0 : index
    %c0_75 = arith.constant 0 : index
    %48 = vector.load %arg8[%c0_74, %c0_75] : memref<128x288xf32, #tpu.memory_space<vmem>>, vector<128x288xf32>
    %c0_76 = arith.constant 0 : index
    %c0_77 = arith.constant 0 : index
    %49 = vector.load %arg4[%c0_76, %c0_77] : memref<288x32xf32, #tpu.memory_space<vmem>>, vector<288x32xf32>
    %cst_78 = arith.constant dense<0.000000e+00> : vector<128x32xf32>
    %50 = tpu.matmul %48, %49, %cst_78 {dimension_numbers = #tpu.dot_dimension_numbers<[1], [0], [0], [1], [0, 0, 1, 1], [], []>} : vector<128x288xf32>, vector<288x32xf32>, vector<128x32xf32> -> vector<128x32xf32>
    %c0_79 = arith.constant 0 : index
    %c0_80 = arith.constant 0 : index
    %51 = vector.load %arg5[%c0_79, %c0_80] : memref<1x32xf32, #tpu.memory_space<vmem>>, vector<1x32xf32>
    %52 = vector.broadcast %51 : vector<1x32xf32> to vector<128x32xf32>
    %53 = arith.addf %50, %52 : vector<128x32xf32>
    %54 = arith.addf %53, %10 : vector<128x32xf32>
    %cst_81 = arith.constant 0.000000e+00 : f32
    %55 = vector.broadcast %cst_81 : f32 to vector<128x32xf32>
    %56 = arith.maximumf %54, %55 : vector<128x32xf32>
    %57 = vector.shape_cast %56 : vector<128x32xf32> to vector<2x8x8x32xf32>
    %c0_82 = arith.constant 0 : index
    %c0_83 = arith.constant 0 : index
    %c0_84 = arith.constant 0 : index
    %c0_85 = arith.constant 0 : index
    %58 = vector.load %arg6[%c0_82, %c0_83, %c0_84, %c0_85] : memref<2x8x8x32xf32, #tpu.memory_space<vmem>>, vector<2x8x8x32xf32>
    tpu.vector_store %arg6[%c0_82, %c0_83, %c0_84, %c0_85], %57 {strides = array<i32>} : memref<2x8x8x32xf32, #tpu.memory_space<vmem>>, vector<2x8x8x32xf32>,
    return
  }
  func.func @transform_0(%arg0: i32) -> (i32, i32, i32) {
    %c0_i32 = arith.constant 0 : i32
    %c0_i32_0 = arith.constant 0 : i32
    %c0_i32_1 = arith.constant 0 : i32
    return %arg0, %c0_i32, %c0_i32_0 : i32, i32, i32
  }
  func.func @transform_1(%arg0: i32) -> (i32, i32) {
    %c0_i32 = arith.constant 0 : i32
    %c0_i32_0 = arith.constant 0 : i32
    %c0_i32_1 = arith.constant 0 : i32
    return %c0_i32, %c0_i32_0 : i32, i32
  }
  func.func @transform_2(%arg0: i32) -> (i32, i32) {
    %c0_i32 = arith.constant 0 : i32
    %c0_i32_0 = arith.constant 0 : i32
    %c0_i32_1 = arith.constant 0 : i32
    return %c0_i32, %c0_i32_0 : i32, i32
  }
  func.func @transform_3(%arg0: i32) -> (i32, i32) {
    %c0_i32 = arith.constant 0 : i32
    %c0_i32_0 = arith.constant 0 : i32
    %c0_i32_1 = arith.constant 0 : i32
    return %c0_i32, %c0_i32_0 : i32, i32
  }
  func.func @transform_4(%arg0: i32) -> (i32, i32) {
    %c0_i32 = arith.constant 0 : i32
    %c0_i32_0 = arith.constant 0 : i32
    %c0_i32_1 = arith.constant 0 : i32
    return %c0_i32, %c0_i32_0 : i32, i32
  }
  func.func @transform_5(%arg0: i32) -> (i32, i32, i32, i32) {
    %c0_i32 = arith.constant 0 : i32
    %c0_i32_0 = arith.constant 0 : i32
    %c0_i32_1 = arith.constant 0 : i32
    %c0_i32_2 = arith.constant 0 : i32
    return %arg0, %c0_i32, %c0_i32_0, %c0_i32_1 : i32, i32, i32, i32
  }
}

</mosaic_0001>

<llo_original>
// kernel: _forward_nhwc_jit.1
$region0: #{_forward_nhwc_jit.1}
  #allocation0 [shape = 'u32[]', space=smem, size = 0x4, offset = 0x4, fixed_abs, tag = 'smem constant byte address 0x4 - core index']
  #allocation1 [shape = 'u32[72,128]{1,0:T(1,128)}', space=vmem, size = 0x9000, scoped, tag = 'internal scratch']
  #allocation2 [shape = 'f32[2,10,10,32]{3,2,1,0:T(8,128)}', space=vmem, size = 0x28000, scoped, tag = 'scratch operand']
  #allocation3 [shape = 'f32[128,288]{1,0:T(8,128)}', space=vmem, size = 0x30000, scoped, tag = 'scratch operand']
  %s0 = inlined_call_operand.vmem [shape: f32[2,64,144], index: 0, kind: input, shape index: {}]
  %s1 = inlined_call_operand.vmem [shape: f32[144,64], index: 1, kind: input, shape index: {}]
  %s2 = inlined_call_operand.vmem [shape: f32[1,64], index: 2, kind: input, shape index: {}]
  %s3 = inlined_call_operand.vmem [shape: f32[288,32], index: 3, kind: input, shape index: {}]
  %s4 = inlined_call_operand.vmem [shape: f32[1,32], index: 4, kind: input, shape index: {}]
  %s5 = inlined_call_operand.hbm [shape: f32[2,8,8,32], index: 5, kind: output, shape index: {}]
  %s6 = sld [smem:[#allocation0]]
  $region30: #{_forward_nhwc_jit.1} parent=0
    _
  %s8 = ssub.s32 1, %s6
  %s9 = scalar_select 0, %s8, %s6
  $region1: #{_forward_nhwc_jit.1} parent=0
    #allocation4 [shape = 'u8[65536]{0}', space=vmem, size = 0x10000, scoped, tag = 'output window, operand 0, single buffered']
    #allocation5 [shape = 's32[1]{0}', space=sflag, size = 0x4, scoped, tag = 'scoped memory for _forward_nhwc_jit.1']
    %10 = vsyncpa [#allocation5], 0
    // Predicated region
    $region2: #{_forward_nhwc_jit.1} parent=1 // pred_check
      _
    $region3: #{_forward_nhwc_jit.1} parent=1 // pred_check_branch
      %12 = sbr.rel (0) target = $region5
    $region4: #{_forward_nhwc_jit.1} parent=1 // pred_region
      _
    $region5: #{_forward_nhwc_jit.1} parent=1 // pred_fallthru
      _
    // Predicated region
    $region6: #{_forward_nhwc_jit.1} parent=1 // pred_check
      _
    $region7: #{_forward_nhwc_jit.1} parent=1 // pred_check_branch
      %14 = sbr.rel (0) target = $region9
    $region8: #{_forward_nhwc_jit.1} parent=1 // pred_region
      _
    $region9: #{_forward_nhwc_jit.1} parent=1 // pred_fallthru
      _
    // Predicated region
    $region10: #{_forward_nhwc_jit.1} parent=1 // pred_check
      _
    $region11: #{_forward_nhwc_jit.1} parent=1 // pred_check_branch
      %16 = sbr.rel (0) target = $region13
    $region12: #{_forward_nhwc_jit.1} parent=1 // pred_region
      _
    $region13: #{_forward_nhwc_jit.1} parent=1 // pred_fallthru
      _
    // Predicated region
    $region14: #{_forward_nhwc_jit.1} parent=1 // pred_check
      _
    $region15: #{_forward_nhwc_jit.1} parent=1 // pred_check_branch
      %18 = sbr.rel (0) target = $region17
    $region16: #{_forward_nhwc_jit.1} parent=1 // pred_region
      _
    $region17: #{_forward_nhwc_jit.1} parent=1 // pred_fallthru
      _
    // Predicated region
    $region18: #{_forward_nhwc_jit.1} parent=1 // pred_check
      _
    $region19: #{_forward_nhwc_jit.1} parent=1 // pred_check_branch
      %20 = sbr.rel (0) target = $region21
    $region20: #{_forward_nhwc_jit.1} parent=1 // pred_region
      _
    $region21: #{_forward_nhwc_jit.1} parent=1 // pred_fallthru
      _
    %v21 = vld [vmem:[%s0] sm:$0xff]
    %v22 = vld [vmem:[%s0 + $0x8] sm:$0xff]
    %v23 = vld [vmem:[%s0 + $0x10] sm:$0xff]
    %v24 = vld [vmem:[%s0 + $0x18] sm:$0xff]
    %v25 = vld [vmem:[%s0 + $0x20] sm:$0xff]
    %v26 = vld [vmem:[%s0 + $0x28] sm:$0xff]
    %v27 = vld [vmem:[%s0 + $0x30] sm:$0xff]
    %v28 = vld [vmem:[%s0 + $0x38] sm:$0xff]
    %v29 = vld [vmem:[%s0 + $0x40] sm:$0xff]
    %v30 = vld [vmem:[%s0 + $0x48] sm:$0xff]
    %v31 = vld [vmem:[%s0 + $0x50] sm:$0xff]
    %v32 = vld [vmem:[%s0 + $0x58] sm:$0xff]
    %v33 = vld [vmem:[%s0 + $0x60] sm:$0xff]
    %v34 = vld [vmem:[%s0 + $0x68] sm:$0xff]
    %v35 = vld [vmem:[%s0 + $0x70] sm:$0xff]
    %v36 = vld [vmem:[%s0 + $0x78] sm:$0xff]
    %v37 = vld [vmem:[%s0 + $0x80] sm:$0xff]
    %v38 = vld [vmem:[%s0 + $0x88] sm:$0xff]
    %v39 = vld [vmem:[%s0 + $0x90] sm:$0xff]
    %v40 = vld [vmem:[%s0 + $0x98] sm:$0xff]
    %v41 = vld [vmem:[%s0 + $0xa0] sm:$0xff]
    %v42 = vld [vmem:[%s0 + $0xa8] sm:$0xff]
    %v43 = vld [vmem:[%s0 + $0xb0] sm:$0xff]
    %v44 = vld [vmem:[%s0 + $0xb8] sm:$0xff]
    %v45 = vld [vmem:[%s0 + $0xc0] sm:$0xff]
    %v46 = vld [vmem:[%s0 + $0xc8] sm:$0xff]
    %v47 = vld [vmem:[%s0 + $0xd0] sm:$0xff]
    %v48 = vld [vmem:[%s0 + $0xd8] sm:$0xff]
    %v49 = vld [vmem:[%s0 + $0xe0] sm:$0xff]
    %v50 = vld [vmem:[%s0 + $0xe8] sm:$0xff]
    %v51 = vld [vmem:[%s0 + $0xf0] sm:$0xff]
    %v52 = vld [vmem:[%s0 + $0xf8] sm:$0xff]
    %v53 = vld [vmem:[%s1] sm:$0xff]
    %v54 = vld [vmem:[%s1 + $0x8] sm:$0xff]
    %v55 = vld [vmem:[%s1 + $0x10] sm:$0xff]
    %v56 = vld [vmem:[%s1 + $0x18] sm:$0xff]
    %v57 = vld [vmem:[%s1 + $0x20] sm:$0xff]
    %v58 = vld [vmem:[%s1 + $0x28] sm:$0xff]
    %v59 = vld [vmem:[%s1 + $0x30] sm:$0xff]
    %v60 = vld [vmem:[%s1 + $0x38] sm:$0xff]
    %v61 = vld [vmem:[%s1 + $0x40] sm:$0xff]
    %v62 = vld [vmem:[%s1 + $0x48] sm:$0xff]
    %v63 = vld [vmem:[%s1 + $0x50] sm:$0xff]
    %v64 = vld [vmem:[%s1 + $0x58] sm:$0xff]
    %v65 = vld [vmem:[%s1 + $0x60] sm:$0xff]
    %v66 = vld [vmem:[%s1 + $0x68] sm:$0xff]
    %v67 = vld [vmem:[%s1 + $0x70] sm:$0xff]
    %v68 = vld [vmem:[%s1 + $0x78] sm:$0xff]
    %v69 = vld [vmem:[%s1 + $0x80] sm:$0xff]
    %v70 = vld [vmem:[%s1 + $0x88] sm:$0xff]
    %v71 = vld [vmem:[%s2] sm:$0x1]
    %v73 = vperm.slane %v71, 0
    %vm75 = vcmask 130048
    %v77 = vsel %vm75, %v22, 0
    %v80 = vsel %vm75, %v24, 0
    %v83 = vsel %vm75, %v26, 0
    %v86 = vsel %vm75, %v28, 0
    %v89 = vsel %vm75, %v30, 0
    %v92 = vsel %vm75, %v32, 0
    %v95 = vsel %vm75, %v34, 0
    %v98 = vsel %vm75, %v36, 0
    %v101 = vsel %vm75, %v38, 0
    %v104 = vsel %vm75, %v40, 0
    %v107 = vsel %vm75, %v42, 0
    %v110 = vsel %vm75, %v44, 0
    %v113 = vsel %vm75, %v46, 0
    %v116 = vsel %vm75, %v48, 0
    %v119 = vsel %vm75, %v50, 0
    %v122 = vsel %vm75, %v52, 0
    %124 = vmatpush.msra.mxu0 %v68
    %125 = vmatpush.msra.mxu0 %v67
    %126 = vmatpush.msra.mxu0 %v66
    %127 = vmatpush.msra.mxu0 %v65
    %128 = vmatpush.msra.mxu0 %v64
    %129 = vmatpush.msra.mxu0 %v63
    %130 = vmatpush.msra.mxu0 %v62
    %131 = vmatpush.msra.mxu0 %v61
    %132 = vmatpush.msra.mxu0 %v60
    %133 = vmatpush.msra.mxu0 %v59
    %134 = vmatpush.msra.mxu0 %v58
    %135 = vmatpush.msra.mxu0 %v57
    %136 = vmatpush.msra.mxu0 %v56
    %137 = vmatpush.msra.mxu0 %v55
    %138 = vmatpush.msra.mxu0 %v54
    %139 = vmatpush.msra.mxu0 %v53
    %140 = vmatmul.f32.gmra.mxu0 %v21
    %v141 = vpop.f32.mrf.mxu0
    %v142 = vadd.f32 %v73, %v141
    %143 = vmatmul.f32.gmra.mxu0 %v23
    %v144 = vpop.f32.mrf.mxu0
    %v145 = vadd.f32 %v73, %v144
    %146 = vmatmul.f32.gmra.mxu0 %v25
    %v147 = vpop.f32.mrf.mxu0
    %v148 = vadd.f32 %v73, %v147
    %149 = vmatmul.f32.gmra.mxu0 %v27
    %v150 = vpop.f32.mrf.mxu0
    %v151 = vadd.f32 %v73, %v150
    %152 = vmatmul.f32.gmra.mxu0 %v29
    %v153 = vpop.f32.mrf.mxu0
    %v154 = vadd.f32 %v73, %v153
    %155 = vmatmul.f32.gmra.mxu0 %v31
    %v156 = vpop.f32.mrf.mxu0
    %v157 = vadd.f32 %v73, %v156
    %158 = vmatmul.f32.gmra.mxu0 %v33
    %v159 = vpop.f32.mrf.mxu0
    %v160 = vadd.f32 %v73, %v159
    %161 = vmatmul.f32.gmra.mxu0 %v35
    %v162 = vpop.f32.mrf.mxu0
    %v163 = vadd.f32 %v73, %v162
    %164 = vmatmul.f32.gmra.mxu0 %v37
    %v165 = vpop.f32.mrf.mxu0
    %v166 = vadd.f32 %v73, %v165
    %167 = vmatmul.f32.gmra.mxu0 %v39
    %v168 = vpop.f32.mrf.mxu0
    %v169 = vadd.f32 %v73, %v168
    %170 = vmatmul.f32.gmra.mxu0 %v41
    %v171 = vpop.f32.mrf.mxu0
    %v172 = vadd.f32 %v73, %v171
    %173 = vmatmul.f32.gmra.mxu0 %v43
    %v174 = vpop.f32.mrf.mxu0
    %v175 = vadd.f32 %v73, %v174
    %176 = vmatmul.f32.gmra.mxu0 %v45
    %v177 = vpop.f32.mrf.mxu0
    %v178 = vadd.f32 %v73, %v177
    %179 = vmatmul.f32.gmra.mxu0 %v47
    %v180 = vpop.f32.mrf.mxu0
    %v181 = vadd.f32 %v73, %v180
    %182 = vmatmul.f32.gmra.mxu0 %v49
    %v183 = vpop.f32.mrf.mxu0
    %v184 = vadd.f32 %v73, %v183
    %185 = vmatmul.f32.gmra.mxu0 %v51
    %v186 = vpop.f32.mrf.mxu0
    %v187 = vadd.f32 %v73, %v186
    %188 = vdwg.mxu0
    %189 = vmatpush.msra.mxu0 0.0
    %190 = vmatpush.msra.mxu0 0.0
    %191 = vmatpush.msra.mxu0 0.0
    %192 = vmatpush.msra.mxu0 0.0
    %193 = vmatpush.msra.mxu0 0.0
    %194 = vmatpush.msra.mxu0 0.0
    %195 = vmatpush.msra.mxu0 0.0
    %196 = vmatpush.msra.mxu0 0.0
    %197 = vmatpush.msra.mxu0 0.0
    %198 = vmatpush.msra.mxu0 0.0
    %199 = vmatpush.msra.mxu0 0.0
    %200 = vmatpush.msra.mxu0 0.0
    %201 = vmatpush.msra.mxu0 0.0
    %202 = vmatpush.msra.mxu0 0.0
    %203 = vmatpush.msra.mxu0 %v70
    %204 = vmatpush.msra.mxu0 %v69
    %205 = vmatmul.f32.gmra.mxu0 %v77
    %v206 = vpop.f32.mrf.mxu0
    %v207 = vadd.f32 %v142, %v206
    %208 = vmatmul.f32.gmra.mxu0 %v80
    %v209 = vpop.f32.mrf.mxu0
    %v210 = vadd.f32 %v145, %v209
    %211 = vmatmul.f32.gmra.mxu0 %v83
    %v212 = vpop.f32.mrf.mxu0
    %v213 = vadd.f32 %v148, %v212
    %214 = vmatmul.f32.gmra.mxu0 %v86
    %v215 = vpop.f32.mrf.mxu0
    %v216 = vadd.f32 %v151, %v215
    %217 = vmatmul.f32.gmra.mxu0 %v89
    %v218 = vpop.f32.mrf.mxu0
    %v219 = vadd.f32 %v154, %v218
    %220 = vmatmul.f32.gmra.mxu0 %v92
    %v221 = vpop.f32.mrf.mxu0
    %v222 = vadd.f32 %v157, %v221
    %223 = vmatmul.f32.gmra.mxu0 %v95
    %v224 = vpop.f32.mrf.mxu0
    %v225 = vadd.f32 %v160, %v224
    %226 = vmatmul.f32.gmra.mxu0 %v98
    %v227 = vpop.f32.mrf.mxu0
    %v228 = vadd.f32 %v163, %v227
    %229 = vmatmul.f32.gmra.mxu0 %v101
    %v230 = vpop.f32.mrf.mxu0
    %v231 = vadd.f32 %v166, %v230
    %232 = vmatmul.f32.gmra.mxu0 %v104
    %v233 = vpop.f32.mrf.mxu0
    %v234 = vadd.f32 %v169, %v233
    %235 = vmatmul.f32.gmra.mxu0 %v107
    %v236 = vpop.f32.mrf.mxu0
    %v237 = vadd.f32 %v172, %v236
    %238 = vmatmul.f32.gmra.mxu0 %v110
    %v239 = vpop.f32.mrf.mxu0
    %v240 = vadd.f32 %v175, %v239
    %241 = vmatmul.f32.gmra.mxu0 %v113
    %v242 = vpop.f32.mrf.mxu0
    %v243 = vadd.f32 %v178, %v242
    %244 = vmatmul.f32.gmra.mxu0 %v116
    %v245 = vpop.f32.mrf.mxu0
    %v246 = vadd.f32 %v181, %v245
    %247 = vmatmul.f32.gmra.mxu0 %v119
    %v248 = vpop.f32.mrf.mxu0
    %v249 = vadd.f32 %v184, %v248
    %250 = vmatmul.f32.gmra.mxu0 %v122
    %v251 = vpop.f32.mrf.mxu0
    %v252 = vadd.f32 %v187, %v251
    %253 = vdwg.mxu0
    %v254 = vmax.f32 %v207, 0.0
    %v255 = vmax.f32 %v210, 0.0
    %v256 = vmax.f32 %v213, 0.0
    %v257 = vmax.f32 %v216, 0.0
    %v258 = vmax.f32 %v219, 0.0
    %v259 = vmax.f32 %v222, 0.0
    %v260 = vmax.f32 %v225, 0.0
    %v261 = vmax.f32 %v228, 0.0
    %v262 = vmax.f32 %v231, 0.0
    %v263 = vmax.f32 %v234, 0.0
    %v264 = vmax.f32 %v237, 0.0
    %v265 = vmax.f32 %v240, 0.0
    %v266 = vmax.f32 %v243, 0.0
    %v267 = vmax.f32 %v246, 0.0
    %v268 = vmax.f32 %v249, 0.0
    %v269 = vmax.f32 %v252, 0.0
    %vm270 = vcmask 261120
    %271 = vst.msk [vmem:[#allocation2] sm:$0xff] %vm270, 0.0
    %vm272 = vcmask 254976
    %273 = vst.msk [vmem:[#allocation2 + $0x8] sm:$0x3] %vm272, 0.0
    %274 = vst.msk [vmem:[#allocation2 + $0xa0] sm:$0xff] %vm270, 0.0
    %275 = vst.msk [vmem:[#allocation2 + $0xa8] sm:$0x3] %vm272, 0.0
    %s276 = scalar_lea.vmem [#allocation2], 144
    %277 = vst.msk [vmem:[%s276] sm:$0xff] %vm270, 0.0
    %278 = vst.msk [vmem:[%s276 + $0x8] sm:$0x3] %vm272, 0.0
    %279 = vst.msk [vmem:[%s276 + $0xa0] sm:$0xff] %vm270, 0.0
    %280 = vst.msk [vmem:[%s276 + $0xa8] sm:$0x3] %vm272, 0.0
    %vm281 = vcmask 253952
    %282 = vst.msk [vmem:[#allocation2] sm:$0x1] %vm281, 0.0
    %283 = vst.msk [vmem:[#allocation2 + $0x10] sm:$0x1] %vm281, 0.0
    %284 = vst.msk [vmem:[#allocation2 + $0x20] sm:$0x1] %vm281, 0.0
    %285 = vst.msk [vmem:[#allocation2 + $0x30] sm:$0x1] %vm281, 0.0
    %286 = vst.msk [vmem:[#allocation2 + $0x40] sm:$0x1] %vm281, 0.0
    %287 = vst.msk [vmem:[#allocation2 + $0x50] sm:$0x1] %vm281, 0.0
    %288 = vst.msk [vmem:[#allocation2 + $0x60] sm:$0x1] %vm281, 0.0
    %289 = vst.msk [vmem:[#allocation2 + $0x70] sm:$0x1] %vm281, 0.0
    %290 = vst.msk [vmem:[#allocation2 + $0x80] sm:$0x1] %vm281, 0.0
    %291 = vst.msk [vmem:[#allocation2 + $0x90] sm:$0x1] %vm281, 0.0
    %292 = vst.msk [vmem:[#allocation2 + $0xa0] sm:$0x1] %vm281, 0.0
    %293 = vst.msk [vmem:[#allocation2 + $0xb0] sm:$0x1] %vm281, 0.0
    %294 = vst.msk [vmem:[#allocation2 + $0xc0] sm:$0x1] %vm281, 0.0
    %295 = vst.msk [vmem:[#allocation2 + $0xd0] sm:$0x1] %vm281, 0.0
    %296 = vst.msk [vmem:[#allocation2 + $0xe0] sm:$0x1] %vm281, 0.0
    %297 = vst.msk [vmem:[#allocation2 + $0xf0] sm:$0x1] %vm281, 0.0
    %298 = vst.msk [vmem:[#allocation2 + $0x100] sm:$0x1] %vm281, 0.0
    %299 = vst.msk [vmem:[#allocation2 + $0x110] sm:$0x1] %vm281, 0.0
    %300 = vst.msk [vmem:[#allocation2 + $0x120] sm:$0x1] %vm281, 0.0
    %301 = vst.msk [vmem:[#allocation2 + $0x130] sm:$0x1] %vm281, 0.0
    %302 = vst.msk [vmem:[#allocation2 + $0x9] sm:$0x1] %vm281, 0.0
    %303 = vst.msk [vmem:[#allocation2 + $0x19] sm:$0x1] %vm281, 0.0
    %304 = vst.msk [vmem:[#allocation2 + $0x29] sm:$0x1] %vm281, 0.0
    %305 = vst.msk [vmem:[#allocation2 + $0x39] sm:$0x1] %vm281, 0.0
    %306 = vst.msk [vmem:[#allocation2 + $0x49] sm:$0x1] %vm281, 0.0
    %307 = vst.msk [vmem:[#allocation2 + $0x59] sm:$0x1] %vm281, 0.0
    %308 = vst.msk [vmem:[#allocation2 + $0x69] sm:$0x1] %vm281, 0.0
    %309 = vst.msk [vmem:[#allocation2 + $0x79] sm:$0x1] %vm281, 0.0
    %310 = vst.msk [vmem:[#allocation2 + $0x89] sm:$0x1] %vm281, 0.0
    %311 = vst.msk [vmem:[#allocation2 + $0x99] sm:$0x1] %vm281, 0.0
    %312 = vst.msk [vmem:[#allocation2 + $0xa9] sm:$0x1] %vm281, 0.0
    %313 = vst.msk [vmem:[#allocation2 + $0xb9] sm:$0x1] %vm281, 0.0
    %314 = vst.msk [vmem:[#allocation2 + $0xc9] sm:$0x1] %vm281, 0.0
    %315 = vst.msk [vmem:[#allocation2 + $0xd9] sm:$0x1] %vm281, 0.0
    %316 = vst.msk [vmem:[#allocation2 + $0xe9] sm:$0x1] %vm281, 0.0
    %317 = vst.msk [vmem:[#allocation2 + $0xf9] sm:$0x1] %vm281, 0.0
    %318 = vst.msk [vmem:[#allocation2 + $0x109] sm:$0x1] %vm281, 0.0
    %319 = vst.msk [vmem:[#allocation2 + $0x119] sm:$0x1] %vm281, 0.0
    %320 = vst.msk [vmem:[#allocation2 + $0x129] sm:$0x1] %vm281, 0.0
    %321 = vst.msk [vmem:[#allocation2 + $0x139] sm:$0x1] %vm281, 0.0
    %s322 = scalar_lea.vmem [#allocation2], 16
    %323 = vst.msk [vmem:[%s322 + $0x1] sm:$0xff] %vm270, %v254
    %324 = vst.msk [vmem:[%s322 + $0x11] sm:$0xff] %vm270, %v255
    %325 = vst.msk [vmem:[%s322 + $0x21] sm:$0xff] %vm270, %v256
    %326 = vst.msk [vmem:[%s322 + $0x31] sm:$0xff] %vm270, %v257
    %327 = vst.msk [vmem:[%s322 + $0x41] sm:$0xff] %vm270, %v258
    %328 = vst.msk [vmem:[%s322 + $0x51] sm:$0xff] %vm270, %v259
    %329 = vst.msk [vmem:[%s322 + $0x61] sm:$0xff] %vm270, %v260
    %330 = vst.msk [vmem:[%s322 + $0x71] sm:$0xff] %vm270, %v261
    %331 = vst.msk [vmem:[%s322 + $0xa1] sm:$0xff] %vm270, %v262
    %332 = vst.msk [vmem:[%s322 + $0xb1] sm:$0xff] %vm270, %v263
    %333 = vst.msk [vmem:[%s322 + $0xc1] sm:$0xff] %vm270, %v264
    %334 = vst.msk [vmem:[%s322 + $0xd1] sm:$0xff] %vm270, %v265
    %335 = vst.msk [vmem:[%s322 + $0xe1] sm:$0xff] %vm270, %v266
    %336 = vst.msk [vmem:[%s322 + $0xf1] sm:$0xff] %vm270, %v267
    %337 = vst.msk [vmem:[%s322 + $0x101] sm:$0xff] %vm270, %v268
    %338 = vst.msk [vmem:[%s322 + $0x111] sm:$0xff] %vm270, %v269
    %v339 = vld [vmem:[#allocation2] sm:$0xff]
    %v340 = vld [vmem:[#allocation2 + $0x10] sm:$0xff]
    %v341 = vld [vmem:[#allocation2 + $0x20] sm:$0xff]
    %v342 = vld [vmem:[#allocation2 + $0x30] sm:$0xff]
    %v343 = vld [vmem:[#allocation2 + $0x40] sm:$0xff]
    %v344 = vld [vmem:[#allocation2 + $0x50] sm:$0xff]
    %v345 = vld [vmem:[#allocation2 + $0x60] sm:$0xff]
    %v346 = vld [vmem:[#allocation2 + $0x70] sm:$0xff]
    %v347 = vld [vmem:[#allocation2 + $0xa0] sm:$0xff]
    %v348 = vld [vmem:[#allocation2 + $0xb0] sm:$0xff]
    %v349 = vld [vmem:[#allocation2 + $0xc0] sm:$0xff]
    %v350 = vld [vmem:[#allocation2 + $0xd0] sm:$0xff]
    %v351 = vld [vmem:[#allocation2 + $0xe0] sm:$0xff]
    %v352 = vld [vmem:[#allocation2 + $0xf0] sm:$0xff]
    %v353 = vld [vmem:[#allocation2 + $0x100] sm:$0xff]
    %v354 = vld [vmem:[#allocation2 + $0x110] sm:$0xff]
    %355 = vst.msk [vmem:[#allocation3] sm:$0xff] %vm270, %v339
    %356 = vst.msk [vmem:[#allocation3 + $0x18] sm:$0xff] %vm270, %v340
    %357 = vst.msk [vmem:[#allocation3 + $0x30] sm:$0xff] %vm270, %v341
    %358 = vst.msk [vmem:[#allocation3 + $0x48] sm:$0xff] %vm270, %v342
    %359 = vst.msk [vmem:[#allocation3 + $0x60] sm:$0xff] %vm270, %v343
    %360 = vst.msk [vmem:[#allocation3 + $0x78] sm:$0xff] %vm270, %v344
    %361 = vst.msk [vmem:[#allocation3 + $0x90] sm:$0xff] %vm270, %v345
    %362 = vst.msk [vmem:[#allocation3 + $0xa8] sm:$0xff] %vm270, %v346
    %363 = vst.msk [vmem:[#allocation3 + $0xc0] sm:$0xff] %vm270, %v347
    %364 = vst.msk [vmem:[#allocation3 + $0xd8] sm:$0xff] %vm270, %v348
    %365 = vst.msk [vmem:[#allocation3 + $0xf0] sm:$0xff] %vm270, %v349
    %366 = vst.msk [vmem:[#allocation3 + $0x108] sm:$0xff] %vm270, %v350
    %367 = vst.msk [vmem:[#allocation3 + $0x120] sm:$0xff] %vm270, %v351
    %368 = vst.msk [vmem:[#allocation3 + $0x138] sm:$0xff] %vm270, %v352
    %369 = vst.msk [vmem:[#allocation3 + $0x150] sm:$0xff] %vm270, %v353
    %370 = vst.msk [vmem:[#allocation3 + $0x168] sm:$0xff] %vm270, %v354
    %v371 = vld [vmem:[#allocation2 + $0x1] sm:$0xff]
    %v372 = vld [vmem:[#allocation2 + $0x11] sm:$0xff]
    %v373 = vld [vmem:[#allocation2 + $0x21] sm:$0xff]
    %v374 = vld [vmem:[#allocation2 + $0x31] sm:$0xff]
    %v375 = vld [vmem:[#allocation2 + $0x41] sm:$0xff]
    %v376 = vld [vmem:[#allocation2 + $0x51] sm:$0xff]
    %v377 = vld [vmem:[#allocation2 + $0x61] sm:$0xff]
    %v378 = vld [vmem:[#allocation2 + $0x71] sm:$0xff]
    %v379 = vld [vmem:[#allocation2 + $0xa1] sm:$0xff]
    %v380 = vld [vmem:[#allocation2 + $0xb1] sm:$0xff]
    %v381 = vld [vmem:[#allocation2 + $0xc1] sm:$0xff]
    %v382 = vld [vmem:[#allocation2 + $0xd1] sm:$0xff]
    %v383 = vld [vmem:[#allocation2 + $0xe1] sm:$0xff]
    %v384 = vld [vmem:[#allocation2 + $0xf1] sm:$0xff]
    %v385 = vld [vmem:[#allocation2 + $0x101] sm:$0xff]
    %v386 = vld [vmem:[#allocation2 + $0x111] sm:$0xff]
    %403 = vrot.lane.b32.xlu0 %v371, 32
    %v404 = vpop.permute.xlu0 %403
    %405 = vrot.lane.b32.xlu0 %v372, 32
    %v406 = vpop.permute.xlu0 %405
    %407 = vrot.lane.b32.xlu0 %v373, 32
    %v408 = vpop.permute.xlu0 %407
    %409 = vrot.lane.b32.xlu0 %v374, 32
    %v410 = vpop.permute.xlu0 %409
    %411 = vrot.lane.b32.xlu0 %v375, 32
    %v412 = vpop.permute.xlu0 %411
    %413 = vrot.lane.b32.xlu0 %v376, 32
    %v414 = vpop.permute.xlu0 %413
    %415 = vrot.lane.b32.xlu0 %v377, 32
    %v416 = vpop.permute.xlu0 %415
    %417 = vrot.lane.b32.xlu0 %v378, 32
    %v418 = vpop.permute.xlu0 %417
    %419 = vrot.lane.b32.xlu0 %v379, 32
    %v420 = vpop.permute.xlu0 %419
    %421 = vrot.lane.b32.xlu0 %v380, 32
    %v422 = vpop.permute.xlu0 %421
    %423 = vrot.lane.b32.xlu0 %v381, 32
    %v424 = vpop.permute.xlu0 %423
    %425 = vrot.lane.b32.xlu0 %v382, 32
    %v426 = vpop.permute.xlu0 %425
    %427 = vrot.lane.b32.xlu0 %v383, 32
    %v428 = vpop.permute.xlu0 %427
    %429 = vrot.lane.b32.xlu0 %v384, 32
    %v430 = vpop.permute.xlu0 %429
    %431 = vrot.lane.b32.xlu0 %v385, 32
    %v432 = vpop.permute.xlu0 %431
    %433 = vrot.lane.b32.xlu0 %v386, 32
    %v434 = vpop.permute.xlu0 %433
    %vm451 = vcmask 523520
    %452 = vst.msk [vmem:[#allocation3] sm:$0xff] %vm451, %v404
    %453 = vst.msk [vmem:[#allocation3 + $0x18] sm:$0xff] %vm451, %v406
    %454 = vst.msk [vmem:[#allocation3 + $0x30] sm:$0xff] %vm451, %v408
    %455 = vst.msk [vmem:[#allocation3 + $0x48] sm:$0xff] %vm451, %v410
    %456 = vst.msk [vmem:[#allocation3 + $0x60] sm:$0xff] %vm451, %v412
    %457 = vst.msk [vmem:[#allocation3 + $0x78] sm:$0xff] %vm451, %v414
    %458 = vst.msk [vmem:[#allocation3 + $0x90] sm:$0xff] %vm451, %v416
    %459 = vst.msk [vmem:[#allocation3 + $0xa8] sm:$0xff] %vm451, %v418
    %460 = vst.msk [vmem:[#allocation3 + $0xc0] sm:$0xff] %vm451, %v420
    %461 = vst.msk [vmem:[#allocation3 + $0xd8] sm:$0xff] %vm451, %v422
    %462 = vst.msk [vmem:[#allocation3 + $0xf0] sm:$0xff] %vm451, %v424
    %463 = vst.msk [vmem:[#allocation3 + $0x108] sm:$0xff] %vm451, %v426
    %464 = vst.msk [vmem:[#allocation3 + $0x120] sm:$0xff] %vm451, %v428
    %465 = vst.msk [vmem:[#allocation3 + $0x138] sm:$0xff] %vm451, %v430
    %466 = vst.msk [vmem:[#allocation3 + $0x150] sm:$0xff] %vm451, %v432
    %467 = vst.msk [vmem:[#allocation3 + $0x168] sm:$0xff] %vm451, %v434
    %v468 = vld [vmem:[#allocation2 + $0x2] sm:$0xff]
    %v469 = vld [vmem:[#allocation2 + $0x12] sm:$0xff]
    %v470 = vld [vmem:[#allocation2 + $0x22] sm:$0xff]
    %v471 = vld [vmem:[#allocation2 + $0x32] sm:$0xff]
    %v472 = vld [vmem:[#allocation2 + $0x42] sm:$0xff]
    %v473 = vld [vmem:[#allocation2 + $0x52] sm:$0xff]
    %v474 = vld [vmem:[#allocation2 + $0x62] sm:$0xff]
    %v475 = vld [vmem:[#allocation2 + $0x72] sm:$0xff]
    %v476 = vld [vmem:[#allocation2 + $0xa2] sm:$0xff]
    %v477 = vld [vmem:[#allocation2 + $0xb2] sm:$0xff]
    %v478 = vld [vmem:[#allocation2 + $0xc2] sm:$0xff]
    %v479 = vld [vmem:[#allocation2 + $0xd2] sm:$0xff]
    %v480 = vld [vmem:[#allocation2 + $0xe2] sm:$0xff]
    %v481 = vld [vmem:[#allocation2 + $0xf2] sm:$0xff]
    %v482 = vld [vmem:[#allocation2 + $0x102] sm:$0xff]
    %v483 = vld [vmem:[#allocation2 + $0x112] sm:$0xff]
    %500 = vrot.lane.b32.xlu0 %v468, 64
    %v501 = vpop.permute.xlu0 %500
    %502 = vrot.lane.b32.xlu0 %v469, 64
    %v503 = vpop.permute.xlu0 %502
    %504 = vrot.lane.b32.xlu0 %v470, 64
    %v505 = vpop.permute.xlu0 %504
    %506 = vrot.lane.b32.xlu0 %v471, 64
    %v507 = vpop.permute.xlu0 %506
    %508 = vrot.lane.b32.xlu0 %v472, 64
    %v509 = vpop.permute.xlu0 %508
    %510 = vrot.lane.b32.xlu0 %v473, 64
    %v511 = vpop.permute.xlu0 %510
    %512 = vrot.lane.b32.xlu0 %v474, 64
    %v513 = vpop.permute.xlu0 %512
    %514 = vrot.lane.b32.xlu0 %v475, 64
    %v515 = vpop.permute.xlu0 %514
    %516 = vrot.lane.b32.xlu0 %v476, 64
    %v517 = vpop.permute.xlu0 %516
    %518 = vrot.lane.b32.xlu0 %v477, 64
    %v519 = vpop.permute.xlu0 %518
    %520 = vrot.lane.b32.xlu0 %v478, 64
    %v521 = vpop.permute.xlu0 %520
    %522 = vrot.lane.b32.xlu0 %v479, 64
    %v523 = vpop.permute.xlu0 %522
    %524 = vrot.lane.b32.xlu0 %v480, 64
    %v525 = vpop.permute.xlu0 %524
    %526 = vrot.lane.b32.xlu0 %v481, 64
    %v527 = vpop.permute.xlu0 %526
    %528 = vrot.lane.b32.xlu0 %v482, 64
    %v529 = vpop.permute.xlu0 %528
    %530 = vrot.lane.b32.xlu0 %v483, 64
    %v531 = vpop.permute.xlu0 %530
    %vm548 = vcmask 785920
    %549 = vst.msk [vmem:[#allocation3] sm:$0xff] %vm548, %v501
    %550 = vst.msk [vmem:[#allocation3 + $0x18] sm:$0xff] %vm548, %v503
    %551 = vst.msk [vmem:[#allocation3 + $0x30] sm:$0xff] %vm548, %v505
    %552 = vst.msk [vmem:[#allocation3 + $0x48] sm:$0xff] %vm548, %v507
    %553 = vst.msk [vmem:[#allocation3 + $0x60] sm:$0xff] %vm548, %v509
    %554 = vst.msk [vmem:[#allocation3 + $0x78] sm:$0xff] %vm548, %v511
    %555 = vst.msk [vmem:[#allocation3 + $0x90] sm:$0xff] %vm548, %v513
    %556 = vst.msk [vmem:[#allocation3 + $0xa8] sm:$0xff] %vm548, %v515
    %557 = vst.msk [vmem:[#allocation3 + $0xc0] sm:$0xff] %vm548, %v517
    %558 = vst.msk [vmem:[#allocation3 + $0xd8] sm:$0xff] %vm548, %v519
    %559 = vst.msk [vmem:[#allocation3 + $0xf0] sm:$0xff] %vm548, %v521
    %560 = vst.msk [vmem:[#allocation3 + $0x108] sm:$0xff] %vm548, %v523
    %561 = vst.msk [vmem:[#allocation3 + $0x120] sm:$0xff] %vm548, %v525
    %562 = vst.msk [vmem:[#allocation3 + $0x138] sm:$0xff] %vm548, %v527
    %563 = vst.msk [vmem:[#allocation3 + $0x150] sm:$0xff] %vm548, %v529
    %564 = vst.msk [vmem:[#allocation3 + $0x168] sm:$0xff] %vm548, %v531
    %v565 = vld [vmem:[%s322] sm:$0xff]
    %v566 = vld [vmem:[%s322 + $0x10] sm:$0xff]
    %v567 = vld [vmem:[%s322 + $0x20] sm:$0xff]
    %v568 = vld [vmem:[%s322 + $0x30] sm:$0xff]
    %v569 = vld [vmem:[%s322 + $0x40] sm:$0xff]
    %v570 = vld [vmem:[%s322 + $0x50] sm:$0xff]
    %v571 = vld [vmem:[%s322 + $0x60] sm:$0xff]
    %v572 = vld [vmem:[%s322 + $0x70] sm:$0xff]
    %v573 = vld [vmem:[%s322 + $0xa0] sm:$0xff]
    %v574 = vld [vmem:[%s322 + $0xb0] sm:$0xff]
    %v575 = vld [vmem:[%s322 + $0xc0] sm:$0xff]
    %v576 = vld [vmem:[%s322 + $0xd0] sm:$0xff]
    %v577 = vld [vmem:[%s322 + $0xe0] sm:$0xff]
    %v578 = vld [vmem:[%s322 + $0xf0] sm:$0xff]
    %v579 = vld [vmem:[%s322 + $0x100] sm:$0xff]
    %v580 = vld [vmem:[%s322 + $0x110] sm:$0xff]
    %597 = vrot.lane.b32.xlu0 %v565, 96
    %v598 = vpop.permute.xlu0 %597
    %599 = vrot.lane.b32.xlu0 %v566, 96
    %v600 = vpop.permute.xlu0 %599
    %601 = vrot.lane.b32.xlu0 %v567, 96
    %v602 = vpop.permute.xlu0 %601
    %603 = vrot.lane.b32.xlu0 %v568, 96
    %v604 = vpop.permute.xlu0 %603
    %605 = vrot.lane.b32.xlu0 %v569, 96
    %v606 = vpop.permute.xlu0 %605
    %607 = vrot.lane.b32.xlu0 %v570, 96
    %v608 = vpop.permute.xlu0 %607
    %609 = vrot.lane.b32.xlu0 %v571, 96
    %v610 = vpop.permute.xlu0 %609
    %611 = vrot.lane.b32.xlu0 %v572, 96
    %v612 = vpop.permute.xlu0 %611
    %613 = vrot.lane.b32.xlu0 %v573, 96
    %v614 = vpop.permute.xlu0 %613
    %615 = vrot.lane.b32.xlu0 %v574, 96
    %v616 = vpop.permute.xlu0 %615
    %617 = vrot.lane.b32.xlu0 %v575, 96
    %v618 = vpop.permute.xlu0 %617
    %619 = vrot.lane.b32.xlu0 %v576, 96
    %v620 = vpop.permute.xlu0 %619
    %621 = vrot.lane.b32.xlu0 %v577, 96
    %v622 = vpop.permute.xlu0 %621
    %623 = vrot.lane.b32.xlu0 %v578, 96
    %v624 = vpop.permute.xlu0 %623
    %625 = vrot.lane.b32.xlu0 %v579, 96
    %v626 = vpop.permute.xlu0 %625
    %627 = vrot.lane.b32.xlu0 %v580, 96
    %v628 = vpop.permute.xlu0 %627
    %vm645 = vcmask 1048320
    %646 = vst.msk [vmem:[#allocation3] sm:$0xff] %vm645, %v598
    %647 = vst.msk [vmem:[#allocation3 + $0x18] sm:$0xff] %vm645, %v600
    %648 = vst.msk [vmem:[#allocation3 + $0x30] sm:$0xff] %vm645, %v602
    %649 = vst.msk [vmem:[#allocation3 + $0x48] sm:$0xff] %vm645, %v604
    %650 = vst.msk [vmem:[#allocation3 + $0x60] sm:$0xff] %vm645, %v606
    %651 = vst.msk [vmem:[#allocation3 + $0x78] sm:$0xff] %vm645, %v608
    %652 = vst.msk [vmem:[#allocation3 + $0x90] sm:$0xff] %vm645, %v610
    %653 = vst.msk [vmem:[#allocation3 + $0xa8] sm:$0xff] %vm645, %v612
    %654 = vst.msk [vmem:[#allocation3 + $0xc0] sm:$0xff] %vm645, %v614
    %655 = vst.msk [vmem:[#allocation3 + $0xd8] sm:$0xff] %vm645, %v616
    %656 = vst.msk [vmem:[#allocation3 + $0xf0] sm:$0xff] %vm645, %v618
    %657 = vst.msk [vmem:[#allocation3 + $0x108] sm:$0xff] %vm645, %v620
    %658 = vst.msk [vmem:[#allocation3 + $0x120] sm:$0xff] %vm645, %v622
    %659 = vst.msk [vmem:[#allocation3 + $0x138] sm:$0xff] %vm645, %v624
    %660 = vst.msk [vmem:[#allocation3 + $0x150] sm:$0xff] %vm645, %v626
    %661 = vst.msk [vmem:[#allocation3 + $0x168] sm:$0xff] %vm645, %v628
    %v662 = vld [vmem:[%s322 + $0x1] sm:$0xff]
    %v663 = vld [vmem:[%s322 + $0x11] sm:$0xff]
    %v664 = vld [vmem:[%s322 + $0x21] sm:$0xff]
    %v665 = vld [vmem:[%s322 + $0x31] sm:$0xff]
    %v666 = vld [vmem:[%s322 + $0x41] sm:$0xff]
    %v667 = vld [vmem:[%s322 + $0x51] sm:$0xff]
    %v668 = vld [vmem:[%s322 + $0x61] sm:$0xff]
    %v669 = vld [vmem:[%s322 + $0x71] sm:$0xff]
    %v670 = vld [vmem:[%s322 + $0xa1] sm:$0xff]
    %v671 = vld [vmem:[%s322 + $0xb1] sm:$0xff]
    %v672 = vld [vmem:[%s322 + $0xc1] sm:$0xff]
    %v673 = vld [vmem:[%s322 + $0xd1] sm:$0xff]
    %v674 = vld [vmem:[%s322 + $0xe1] sm:$0xff]
    %v675 = vld [vmem:[%s322 + $0xf1] sm:$0xff]
    %v676 = vld [vmem:[%s322 + $0x101] sm:$0xff]
    %v677 = vld [vmem:[%s322 + $0x111] sm:$0xff]
    %678 = vst.msk [vmem:[#allocation3 + $0x8] sm:$0xff] %vm270, %v662
    %679 = vst.msk [vmem:[#allocation3 + $0x20] sm:$0xff] %vm270, %v663
    %680 = vst.msk [vmem:[#allocation3 + $0x38] sm:$0xff] %vm270, %v664
    %681 = vst.msk [vmem:[#allocation3 + $0x50] sm:$0xff] %vm270, %v665
    %682 = vst.msk [vmem:[#allocation3 + $0x68] sm:$0xff] %vm270, %v666
    %683 = vst.msk [vmem:[#allocation3 + $0x80] sm:$0xff] %vm270, %v667
    %684 = vst.msk [vmem:[#allocation3 + $0x98] sm:$0xff] %vm270, %v668
    %685 = vst.msk [vmem:[#allocation3 + $0xb0] sm:$0xff] %vm270, %v669
    %686 = vst.msk [vmem:[#allocation3 + $0xc8] sm:$0xff] %vm270, %v670
    %687 = vst.msk [vmem:[#allocation3 + $0xe0] sm:$0xff] %vm270, %v671
    %688 = vst.msk [vmem:[#allocation3 + $0xf8] sm:$0xff] %vm270, %v672
    %689 = vst.msk [vmem:[#allocation3 + $0x110] sm:$0xff] %vm270, %v673
    %690 = vst.msk [vmem:[#allocation3 + $0x128] sm:$0xff] %vm270, %v674
    %691 = vst.msk [vmem:[#allocation3 + $0x140] sm:$0xff] %vm270, %v675
    %692 = vst.msk [vmem:[#allocation3 + $0x158] sm:$0xff] %vm270, %v676
    %693 = vst.msk [vmem:[#allocation3 + $0x170] sm:$0xff] %vm270, %v677
    %v694 = vld [vmem:[%s322 + $0x2] sm:$0xff]
    %v695 = vld [vmem:[%s322 + $0x12] sm:$0xff]
    %v696 = vld [vmem:[%s322 + $0x22] sm:$0xff]
    %v697 = vld [vmem:[%s322 + $0x32] sm:$0xff]
    %v698 = vld [vmem:[%s322 + $0x42] sm:$0xff]
    %v699 = vld [vmem:[%s322 + $0x52] sm:$0xff]
    %v700 = vld [vmem:[%s322 + $0x62] sm:$0xff]
    %v701 = vld [vmem:[%s322 + $0x72] sm:$0xff]
    %v702 = vld [vmem:[%s322 + $0xa2] sm:$0xff]
    %v703 = vld [vmem:[%s322 + $0xb2] sm:$0xff]
    %v704 = vld [vmem:[%s322 + $0xc2] sm:$0xff]
    %v705 = vld [vmem:[%s322 + $0xd2] sm:$0xff]
    %v706 = vld [vmem:[%s322 + $0xe2] sm:$0xff]
    %v707 = vld [vmem:[%s322 + $0xf2] sm:$0xff]
    %v708 = vld [vmem:[%s322 + $0x102] sm:$0xff]
    %v709 = vld [vmem:[%s322 + $0x112] sm:$0xff]
    %726 = vrot.lane.b32.xlu0 %v694, 32
    %v727 = vpop.permute.xlu0 %726
    %728 = vrot.lane.b32.xlu0 %v695, 32
    %v729 = vpop.permute.xlu0 %728
    %730 = vrot.lane.b32.xlu0 %v696, 32
    %v731 = vpop.permute.xlu0 %730
    %732 = vrot.lane.b32.xlu0 %v697, 32
    %v733 = vpop.permute.xlu0 %732
    %734 = vrot.lane.b32.xlu0 %v698, 32
    %v735 = vpop.permute.xlu0 %734
    %736 = vrot.lane.b32.xlu0 %v699, 32
    %v737 = vpop.permute.xlu0 %736
    %738 = vrot.lane.b32.xlu0 %v700, 32
    %v739 = vpop.permute.xlu0 %738
    %740 = vrot.lane.b32.xlu0 %v701, 32
    %v741 = vpop.permute.xlu0 %740
    %742 = vrot.lane.b32.xlu0 %v702, 32
    %v743 = vpop.permute.xlu0 %742
    %744 = vrot.lane.b32.xlu0 %v703, 32
    %v745 = vpop.permute.xlu0 %744
    %746 = vrot.lane.b32.xlu0 %v704, 32
    %v747 = vpop.permute.xlu0 %746
    %748 = vrot.lane.b32.xlu0 %v705, 32
    %v749 = vpop.permute.xlu0 %748
    %750 = vrot.lane.b32.xlu0 %v706, 32
    %v751 = vpop.permute.xlu0 %750
    %752 = vrot.lane.b32.xlu0 %v707, 32
    %v753 = vpop.permute.xlu0 %752
    %754 = vrot.lane.b32.xlu0 %v708, 32
    %v755 = vpop.permute.xlu0 %754
    %756 = vrot.lane.b32.xlu0 %v709, 32
    %v757 = vpop.permute.xlu0 %756
    %774 = vst.msk [vmem:[#allocation3 + $0x8] sm:$0xff] %vm451, %v727
    %775 = vst.msk [vmem:[#allocation3 + $0x20] sm:$0xff] %vm451, %v729
    %776 = vst.msk [vmem:[#allocation3 + $0x38] sm:$0xff] %vm451, %v731
    %777 = vst.msk [vmem:[#allocation3 + $0x50] sm:$0xff] %vm451, %v733
    %778 = vst.msk [vmem:[#allocation3 + $0x68] sm:$0xff] %vm451, %v735
    %779 = vst.msk [vmem:[#allocation3 + $0x80] sm:$0xff] %vm451, %v737
    %780 = vst.msk [vmem:[#allocation3 + $0x98] sm:$0xff] %vm451, %v739
    %781 = vst.msk [vmem:[#allocation3 + $0xb0] sm:$0xff] %vm451, %v741
    %782 = vst.msk [vmem:[#allocation3 + $0xc8] sm:$0xff] %vm451, %v743
    %783 = vst.msk [vmem:[#allocation3 + $0xe0] sm:$0xff] %vm451, %v745
    %784 = vst.msk [vmem:[#allocation3 + $0xf8] sm:$0xff] %vm451, %v747
    %785 = vst.msk [vmem:[#allocation3 + $0x110] sm:$0xff] %vm451, %v749
    %786 = vst.msk [vmem:[#allocation3 + $0x128] sm:$0xff] %vm451, %v751
    %787 = vst.msk [vmem:[#allocation3 + $0x140] sm:$0xff] %vm451, %v753
    %788 = vst.msk [vmem:[#allocation3 + $0x158] sm:$0xff] %vm451, %v755
    %789 = vst.msk [vmem:[#allocation3 + $0x170] sm:$0xff] %vm451, %v757
    %s790 = scalar_lea.vmem [#allocation2], 32
    %v791 = vld [vmem:[%s790] sm:$0xff]
    %v792 = vld [vmem:[%s790 + $0x10] sm:$0xff]
    %v793 = vld [vmem:[%s790 + $0x20] sm:$0xff]
    %v794 = vld [vmem:[%s790 + $0x30] sm:$0xff]
    %v795 = vld [vmem:[%s790 + $0x40] sm:$0xff]
    %v796 = vld [vmem:[%s790 + $0x50] sm:$0xff]
    %v797 = vld [vmem:[%s790 + $0x60] sm:$0xff]
    %v798 = vld [vmem:[%s790 + $0x70] sm:$0xff]
    %v799 = vld [vmem:[%s790 + $0xa0] sm:$0xff]
    %v800 = vld [vmem:[%s790 + $0xb0] sm:$0xff]
    %v801 = vld [vmem:[%s790 + $0xc0] sm:$0xff]
    %v802 = vld [vmem:[%s790 + $0xd0] sm:$0xff]
    %v803 = vld [vmem:[%s790 + $0xe0] sm:$0xff]
    %v804 = vld [vmem:[%s790 + $0xf0] sm:$0xff]
    %v805 = vld [vmem:[%s790 + $0x100] sm:$0xff]
    %v806 = vld [vmem:[%s790 + $0x110] sm:$0xff]
    %823 = vrot.lane.b32.xlu0 %v791, 64
    %v824 = vpop.permute.xlu0 %823
    %825 = vrot.lane.b32.xlu0 %v792, 64
    %v826 = vpop.permute.xlu0 %825
    %827 = vrot.lane.b32.xlu0 %v793, 64
    %v828 = vpop.permute.xlu0 %827
    %829 = vrot.lane.b32.xlu0 %v794, 64
    %v830 = vpop.permute.xlu0 %829
    %831 = vrot.lane.b32.xlu0 %v795, 64
    %v832 = vpop.permute.xlu0 %831
    %833 = vrot.lane.b32.xlu0 %v796, 64
    %v834 = vpop.permute.xlu0 %833
    %835 = vrot.lane.b32.xlu0 %v797, 64
    %v836 = vpop.permute.xlu0 %835
    %837 = vrot.lane.b32.xlu0 %v798, 64
    %v838 = vpop.permute.xlu0 %837
    %839 = vrot.lane.b32.xlu0 %v799, 64
    %v840 = vpop.permute.xlu0 %839
    %841 = vrot.lane.b32.xlu0 %v800, 64
    %v842 = vpop.permute.xlu0 %841
    %843 = vrot.lane.b32.xlu0 %v801, 64
    %v844 = vpop.permute.xlu0 %843
    %845 = vrot.lane.b32.xlu0 %v802, 64
    %v846 = vpop.permute.xlu0 %845
    %847 = vrot.lane.b32.xlu0 %v803, 64
    %v848 = vpop.permute.xlu0 %847
    %849 = vrot.lane.b32.xlu0 %v804, 64
    %v850 = vpop.permute.xlu0 %849
    %851 = vrot.lane.b32.xlu0 %v805, 64
    %v852 = vpop.permute.xlu0 %851
    %853 = vrot.lane.b32.xlu0 %v806, 64
    %v854 = vpop.permute.xlu0 %853
    %871 = vst.msk [vmem:[#allocation3 + $0x8] sm:$0xff] %vm548, %v824
    %872 = vst.msk [vmem:[#allocation3 + $0x20] sm:$0xff] %vm548, %v826
    %873 = vst.msk [vmem:[#allocation3 + $0x38] sm:$0xff] %vm548, %v828
    %874 = vst.msk [vmem:[#allocation3 + $0x50] sm:$0xff] %vm548, %v830
    %875 = vst.msk [vmem:[#allocation3 + $0x68] sm:$0xff] %vm548, %v832
    %876 = vst.msk [vmem:[#allocation3 + $0x80] sm:$0xff] %vm548, %v834
    %877 = vst.msk [vmem:[#allocation3 + $0x98] sm:$0xff] %vm548, %v836
    %878 = vst.msk [vmem:[#allocation3 + $0xb0] sm:$0xff] %vm548, %v838
    %879 = vst.msk [vmem:[#allocation3 + $0xc8] sm:$0xff] %vm548, %v840
    %880 = vst.msk [vmem:[#allocation3 + $0xe0] sm:$0xff] %vm548, %v842
    %881 = vst.msk [vmem:[#allocation3 + $0xf8] sm:$0xff] %vm548, %v844
    %882 = vst.msk [vmem:[#allocation3 + $0x110] sm:$0xff] %vm548, %v846
    %883 = vst.msk [vmem:[#allocation3 + $0x128] sm:$0xff] %vm548, %v848
    %884 = vst.msk [vmem:[#allocation3 + $0x140] sm:$0xff] %vm548, %v850
    %885 = vst.msk [vmem:[#allocation3 + $0x158] sm:$0xff] %vm548, %v852
    %886 = vst.msk [vmem:[#allocation3 + $0x170] sm:$0xff] %vm548, %v854
    %v887 = vld [vmem:[%s790 + $0x1] sm:$0xff]
    %v888 = vld [vmem:[%s790 + $0x11] sm:$0xff]
    %v889 = vld [vmem:[%s790 + $0x21] sm:$0xff]
    %v890 = vld [vmem:[%s790 + $0x31] sm:$0xff]
    %v891 = vld [vmem:[%s790 + $0x41] sm:$0xff]
    %v892 = vld [vmem:[%s790 + $0x51] sm:$0xff]
    %v893 = vld [vmem:[%s790 + $0x61] sm:$0xff]
    %v894 = vld [vmem:[%s790 + $0x71] sm:$0xff]
    %v895 = vld [vmem:[%s790 + $0xa1] sm:$0xff]
    %v896 = vld [vmem:[%s790 + $0xb1] sm:$0xff]
    %v897 = vld [vmem:[%s790 + $0xc1] sm:$0xff]
    %v898 = vld [vmem:[%s790 + $0xd1] sm:$0xff]
    %v899 = vld [vmem:[%s790 + $0xe1] sm:$0xff]
    %v900 = vld [vmem:[%s790 + $0xf1] sm:$0xff]
    %v901 = vld [vmem:[%s790 + $0x101] sm:$0xff]
    %v902 = vld [vmem:[%s790 + $0x111] sm:$0xff]
    %919 = vrot.lane.b32.xlu0 %v887, 96
    %v920 = vpop.permute.xlu0 %919
    %921 = vrot.lane.b32.xlu0 %v888, 96
    %v922 = vpop.permute.xlu0 %921
    %923 = vrot.lane.b32.xlu0 %v889, 96
    %v924 = vpop.permute.xlu0 %923
    %925 = vrot.lane.b32.xlu0 %v890, 96
    %v926 = vpop.permute.xlu0 %925
    %927 = vrot.lane.b32.xlu0 %v891, 96
    %v928 = vpop.permute.xlu0 %927
    %929 = vrot.lane.b32.xlu0 %v892, 96
    %v930 = vpop.permute.xlu0 %929
    %931 = vrot.lane.b32.xlu0 %v893, 96
    %v932 = vpop.permute.xlu0 %931
    %933 = vrot.lane.b32.xlu0 %v894, 96
    %v934 = vpop.permute.xlu0 %933
    %935 = vrot.lane.b32.xlu0 %v895, 96
    %v936 = vpop.permute.xlu0 %935
    %937 = vrot.lane.b32.xlu0 %v896, 96
    %v938 = vpop.permute.xlu0 %937
    %939 = vrot.lane.b32.xlu0 %v897, 96
    %v940 = vpop.permute.xlu0 %939
    %941 = vrot.lane.b32.xlu0 %v898, 96
    %v942 = vpop.permute.xlu0 %941
    %943 = vrot.lane.b32.xlu0 %v899, 96
    %v944 = vpop.permute.xlu0 %943
    %945 = vrot.lane.b32.xlu0 %v900, 96
    %v946 = vpop.permute.xlu0 %945
    %947 = vrot.lane.b32.xlu0 %v901, 96
    %v948 = vpop.permute.xlu0 %947
    %949 = vrot.lane.b32.xlu0 %v902, 96
    %v950 = vpop.permute.xlu0 %949
    %967 = vst.msk [vmem:[#allocation3 + $0x8] sm:$0xff] %vm645, %v920
    %968 = vst.msk [vmem:[#allocation3 + $0x20] sm:$0xff] %vm645, %v922
    %969 = vst.msk [vmem:[#allocation3 + $0x38] sm:$0xff] %vm645, %v924
    %970 = vst.msk [vmem:[#allocation3 + $0x50] sm:$0xff] %vm645, %v926
    %971 = vst.msk [vmem:[#allocation3 + $0x68] sm:$0xff] %vm645, %v928
    %972 = vst.msk [vmem:[#allocation3 + $0x80] sm:$0xff] %vm645, %v930
    %973 = vst.msk [vmem:[#allocation3 + $0x98] sm:$0xff] %vm645, %v932
    %974 = vst.msk [vmem:[#allocation3 + $0xb0] sm:$0xff] %vm645, %v934
    %975 = vst.msk [vmem:[#allocation3 + $0xc8] sm:$0xff] %vm645, %v936
    %976 = vst.msk [vmem:[#allocation3 + $0xe0] sm:$0xff] %vm645, %v938
    %977 = vst.msk [vmem:[#allocation3 + $0xf8] sm:$0xff] %vm645, %v940
    %978 = vst.msk [vmem:[#allocation3 + $0x110] sm:$0xff] %vm645, %v942
    %979 = vst.msk [vmem:[#allocation3 + $0x128] sm:$0xff] %vm645, %v944
    %980 = vst.msk [vmem:[#allocation3 + $0x140] sm:$0xff] %vm645, %v946
    %981 = vst.msk [vmem:[#allocation3 + $0x158] sm:$0xff] %vm645, %v948
    %982 = vst.msk [vmem:[#allocation3 + $0x170] sm:$0xff] %vm645, %v950
    %v983 = vld [vmem:[%s790 + $0x2] sm:$0xff]
    %v984 = vld [vmem:[%s790 + $0x12] sm:$0xff]
    %v985 = vld [vmem:[%s790 + $0x22] sm:$0xff]
    %v986 = vld [vmem:[%s790 + $0x32] sm:$0xff]
    %v987 = vld [vmem:[%s790 + $0x42] sm:$0xff]
    %v988 = vld [vmem:[%s790 + $0x52] sm:$0xff]
    %v989 = vld [vmem:[%s790 + $0x62] sm:$0xff]
    %v990 = vld [vmem:[%s790 + $0x72] sm:$0xff]
    %v991 = vld [vmem:[%s790 + $0xa2] sm:$0xff]
    %v992 = vld [vmem:[%s790 + $0xb2] sm:$0xff]
    %v993 = vld [vmem:[%s790 + $0xc2] sm:$0xff]
    %v994 = vld [vmem:[%s790 + $0xd2] sm:$0xff]
    %v995 = vld [vmem:[%s790 + $0xe2] sm:$0xff]
    %v996 = vld [vmem:[%s790 + $0xf2] sm:$0xff]
    %v997 = vld [vmem:[%s790 + $0x102] sm:$0xff]
    %v998 = vld [vmem:[%s790 + $0x112] sm:$0xff]
    %999 = vst.msk [vmem:[#allocation3 + $0x10] sm:$0xff] %vm270, %v983
    %1000 = vst.msk [vmem:[#allocation3 + $0x28] sm:$0xff] %vm270, %v984
    %1001 = vst.msk [vmem:[#allocation3 + $0x40] sm:$0xff] %vm270, %v985
    %1002 = vst.msk [vmem:[#allocation3 + $0x58] sm:$0xff] %vm270, %v986
    %1003 = vst.msk [vmem:[#allocation3 + $0x70] sm:$0xff] %vm270, %v987
    %1004 = vst.msk [vmem:[#allocation3 + $0x88] sm:$0xff] %vm270, %v988
    %1005 = vst.msk [vmem:[#allocation3 + $0xa0] sm:$0xff] %vm270, %v989
    %1006 = vst.msk [vmem:[#allocation3 + $0xb8] sm:$0xff] %vm270, %v990
    %1007 = vst.msk [vmem:[#allocation3 + $0xd0] sm:$0xff] %vm270, %v991
    %1008 = vst.msk [vmem:[#allocation3 + $0xe8] sm:$0xff] %vm270, %v992
    %1009 = vst.msk [vmem:[#allocation3 + $0x100] sm:$0xff] %vm270, %v993
    %1010 = vst.msk [vmem:[#allocation3 + $0x118] sm:$0xff] %vm270, %v994
    %1011 = vst.msk [vmem:[#allocation3 + $0x130] sm:$0xff] %vm270, %v995
    %1012 = vst.msk [vmem:[#allocation3 + $0x148] sm:$0xff] %vm270, %v996
    %1013 = vst.msk [vmem:[#allocation3 + $0x160] sm:$0xff] %vm270, %v997
    %1014 = vst.msk [vmem:[#allocation3 + $0x178] sm:$0xff] %vm270, %v998
    %v1015 = vld [vmem:[#allocation3] sm:$0xff]
    %v1016 = vld [vmem:[#allocation3 + $0x8] sm:$0xff]
    %v1017 = vld [vmem:[#allocation3 + $0x10] sm:$0xff]
    %v1018 = vld [vmem:[#allocation3 + $0x18] sm:$0xff]
    %v1019 = vld [vmem:[#allocation3 + $0x20] sm:$0xff]
    %v1020 = vld [vmem:[#allocation3 + $0x28] sm:$0xff]
    %v1021 = vld [vmem:[#allocation3 + $0x30] sm:$0xff]
    %v1022 = vld [vmem:[#allocation3 + $0x38] sm:$0xff]
    %v1023 = vld [vmem:[#allocation3 + $0x40] sm:$0xff]
    %v1024 = vld [vmem:[#allocation3 + $0x48] sm:$0xff]
    %v1025 = vld [vmem:[#allocation3 + $0x50] sm:$0xff]
    %v1026 = vld [vmem:[#allocation3 + $0x58] sm:$0xff]
    %v1027 = vld [vmem:[#allocation3 + $0x60] sm:$0xff]
    %v1028 = vld [vmem:[#allocation3 + $0x68] sm:$0xff]
    %v1029 = vld [vmem:[#allocation3 + $0x70] sm:$0xff]
    %v1030 = vld [vmem:[#allocation3 + $0x78] sm:$0xff]
    %v1031 = vld [vmem:[#allocation3 + $0x80] sm:$0xff]
    %v1032 = vld [vmem:[#allocation3 + $0x88] sm:$0xff]
    %v1033 = vld [vmem:[#allocation3 + $0x90] sm:$0xff]
    %v1034 = vld [vmem:[#allocation3 + $0x98] sm:$0xff]
    %v1035 = vld [vmem:[#allocation3 + $0xa0] sm:$0xff]
    %v1036 = vld [vmem:[#allocation3 + $0xa8] sm:$0xff]
    %v1037 = vld [vmem:[#allocation3 + $0xb0] sm:$0xff]
    %v1038 = vld [vmem:[#allocation3 + $0xb8] sm:$0xff]
    %v1039 = vld [vmem:[#allocation3 + $0xc0] sm:$0xff]
    %v1040 = vld [vmem:[#allocation3 + $0xc8] sm:$0xff]
    %v1041 = vld [vmem:[#allocation3 + $0xd0] sm:$0xff]
    %v1042 = vld [vmem:[#allocation3 + $0xd8] sm:$0xff]
    %v1043 = vld [vmem:[#allocation3 + $0xe0] sm:$0xff]
    %v1044 = vld [vmem:[#allocation3 + $0xe8] sm:$0xff]
    %v1045 = vld [vmem:[#allocation3 + $0xf0] sm:$0xff]
    %v1046 = vld [vmem:[#allocation3 + $0xf8] sm:$0xff]
    %v1047 = vld [vmem:[#allocation3 + $0x100] sm:$0xff]
    %v1048 = vld [vmem:[#allocation3 + $0x108] sm:$0xff]
    %v1049 = vld [vmem:[#allocation3 + $0x110] sm:$0xff]
    %v1050 = vld [vmem:[#allocation3 + $0x118] sm:$0xff]
    %v1051 = vld [vmem:[#allocation3 + $0x120] sm:$0xff]
    %v1052 = vld [vmem:[#allocation3 + $0x128] sm:$0xff]
    %v1053 = vld [vmem:[#allocation3 + $0x130] sm:$0xff]
    %v1054 = vld [vmem:[#allocation3 + $0x138] sm:$0xff]
    %v1055 = vld [vmem:[#allocation3 + $0x140] sm:$0xff]
    %v1056 = vld [vmem:[#allocation3 + $0x148] sm:$0xff]
    %v1057 = vld [vmem:[#allocation3 + $0x150] sm:$0xff]
    %v1058 = vld [vmem:[#allocation3 + $0x158] sm:$0xff]
    %v1059 = vld [vmem:[#allocation3 + $0x160] sm:$0xff]
    %v1060 = vld [vmem:[#allocation3 + $0x168] sm:$0xff]
    %v1061 = vld [vmem:[#allocation3 + $0x170] sm:$0xff]
    %v1062 = vld [vmem:[#allocation3 + $0x178] sm:$0xff]
    %v1063 = vld [vmem:[%s3] sm:$0xff]
    %v1064 = vld [vmem:[%s3 + $0x8] sm:$0xff]
    %v1065 = vld [vmem:[%s3 + $0x10] sm:$0xff]
    %v1066 = vld [vmem:[%s3 + $0x18] sm:$0xff]
    %v1067 = vld [vmem:[%s3 + $0x20] sm:$0xff]
    %v1068 = vld [vmem:[%s3 + $0x28] sm:$0xff]
    %v1069 = vld [vmem:[%s3 + $0x30] sm:$0xff]
    %v1070 = vld [vmem:[%s3 + $0x38] sm:$0xff]
    %v1071 = vld [vmem:[%s3 + $0x40] sm:$0xff]
    %v1072 = vld [vmem:[%s3 + $0x48] sm:$0xff]
    %v1073 = vld [vmem:[%s3 + $0x50] sm:$0xff]
    %v1074 = vld [vmem:[%s3 + $0x58] sm:$0xff]
    %v1075 = vld [vmem:[%s3 + $0x60] sm:$0xff]
    %v1076 = vld [vmem:[%s3 + $0x68] sm:$0xff]
    %v1077 = vld [vmem:[%s3 + $0x70] sm:$0xff]
    %v1078 = vld [vmem:[%s3 + $0x78] sm:$0xff]
    %v1079 = vld [vmem:[%s3 + $0x80] sm:$0xff]
    %v1080 = vld [vmem:[%s3 + $0x88] sm:$0xff]
    %v1081 = vld [vmem:[%s3 + $0x90] sm:$0xff]
    %v1082 = vld [vmem:[%s3 + $0x98] sm:$0xff]
    %v1083 = vld [vmem:[%s3 + $0xa0] sm:$0xff]
    %v1084 = vld [vmem:[%s3 + $0xa8] sm:$0xff]
    %v1085 = vld [vmem:[%s3 + $0xb0] sm:$0xff]
    %v1086 = vld [vmem:[%s3 + $0xb8] sm:$0xff]
    %v1087 = vld [vmem:[%s3 + $0xc0] sm:$0xff]
    %v1088 = vld [vmem:[%s3 + $0xc8] sm:$0xff]
    %v1089 = vld [vmem:[%s3 + $0xd0] sm:$0xff]
    %v1090 = vld [vmem:[%s3 + $0xd8] sm:$0xff]
    %v1091 = vld [vmem:[%s3 + $0xe0] sm:$0xff]
    %v1092 = vld [vmem:[%s3 + $0xe8] sm:$0xff]
    %v1093 = vld [vmem:[%s3 + $0xf0] sm:$0xff]
    %v1094 = vld [vmem:[%s3 + $0xf8] sm:$0xff]
    %v1095 = vld [vmem:[%s3 + $0x100] sm:$0xff]
    %v1096 = vld [vmem:[%s3 + $0x108] sm:$0xff]
    %v1097 = vld [vmem:[%s3 + $0x110] sm:$0xff]
    %v1098 = vld [vmem:[%s3 + $0x118] sm:$0xff]
    %v1099 = vld [vmem:[%s4] sm:$0x1]
    %v1101 = vperm.slane %v1099, 0
    %v1104 = vsel %vm270, %v1017, 0
    %v1107 = vsel %vm270, %v1020, 0
    %v1110 = vsel %vm270, %v1023, 0
    %v1113 = vsel %vm270, %v1026, 0
    %v1116 = vsel %vm270, %v1029, 0
    %v1119 = vsel %vm270, %v1032, 0
    %v1122 = vsel %vm270, %v1035, 0
    %v1125 = vsel %vm270, %v1038, 0
    %v1128 = vsel %vm270, %v1041, 0
    %v1131 = vsel %vm270, %v1044, 0
    %v1134 = vsel %vm270, %v1047, 0
    %v1137 = vsel %vm270, %v1050, 0
    %v1140 = vsel %vm270, %v1053, 0
    %v1143 = vsel %vm270, %v1056, 0
    %v1146 = vsel %vm270, %v1059, 0
    %v1149 = vsel %vm270, %v1062, 0
    %1151 = vmatpush.msra.mxu0 %v1078
    %1152 = vmatpush.msra.mxu0 %v1077
    %1153 = vmatpush.msra.mxu0 %v1076
    %1154 = vmatpush.msra.mxu0 %v1075
    %1155 = vmatpush.msra.mxu0 %v1074
    %1156 = vmatpush.msra.mxu0 %v1073
    %1157 = vmatpush.msra.mxu0 %v1072
    %1158 = vmatpush.msra.mxu0 %v1071
    %1159 = vmatpush.msra.mxu0 %v1070
    %1160 = vmatpush.msra.mxu0 %v1069
    %1161 = vmatpush.msra.mxu0 %v1068
    %1162 = vmatpush.msra.mxu0 %v1067
    %1163 = vmatpush.msra.mxu0 %v1066
    %1164 = vmatpush.msra.mxu0 %v1065
    %1165 = vmatpush.msra.mxu0 %v1064
    %1166 = vmatpush.msra.mxu0 %v1063
    %1167 = vmatmul.f32.gmra.mxu0 %v1015
    %v1168 = vpop.f32.mrf.mxu0
    %v1169 = vadd.f32 %v1101, %v1168
    %1170 = vmatmul.f32.gmra.mxu0 %v1018
    %v1171 = vpop.f32.mrf.mxu0
    %v1172 = vadd.f32 %v1101, %v1171
    %1173 = vmatmul.f32.gmra.mxu0 %v1021
    %v1174 = vpop.f32.mrf.mxu0
    %v1175 = vadd.f32 %v1101, %v1174
    %1176 = vmatmul.f32.gmra.mxu0 %v1024
    %v1177 = vpop.f32.mrf.mxu0
    %v1178 = vadd.f32 %v1101, %v1177
    %1179 = vmatmul.f32.gmra.mxu0 %v1027
    %v1180 = vpop.f32.mrf.mxu0
    %v1181 = vadd.f32 %v1101, %v1180
    %1182 = vmatmul.f32.gmra.mxu0 %v1030
    %v1183 = vpop.f32.mrf.mxu0
    %v1184 = vadd.f32 %v1101, %v1183
    %1185 = vmatmul.f32.gmra.mxu0 %v1033
    %v1186 = vpop.f32.mrf.mxu0
    %v1187 = vadd.f32 %v1101, %v1186
    %1188 = vmatmul.f32.gmra.mxu0 %v1036
    %v1189 = vpop.f32.mrf.mxu0
    %v1190 = vadd.f32 %v1101, %v1189
    %1191 = vmatmul.f32.gmra.mxu0 %v1039
    %v1192 = vpop.f32.mrf.mxu0
    %v1193 = vadd.f32 %v1101, %v1192
    %1194 = vmatmul.f32.gmra.mxu0 %v1042
    %v1195 = vpop.f32.mrf.mxu0
    %v1196 = vadd.f32 %v1101, %v1195
    %1197 = vmatmul.f32.gmra.mxu0 %v1045
    %v1198 = vpop.f32.mrf.mxu0
    %v1199 = vadd.f32 %v1101, %v1198
    %1200 = vmatmul.f32.gmra.mxu0 %v1048
    %v1201 = vpop.f32.mrf.mxu0
    %v1202 = vadd.f32 %v1101, %v1201
    %1203 = vmatmul.f32.gmra.mxu0 %v1051
    %v1204 = vpop.f32.mrf.mxu0
    %v1205 = vadd.f32 %v1101, %v1204
    %1206 = vmatmul.f32.gmra.mxu0 %v1054
    %v1207 = vpop.f32.mrf.mxu0
    %v1208 = vadd.f32 %v1101, %v1207
    %1209 = vmatmul.f32.gmra.mxu0 %v1057
    %v1210 = vpop.f32.mrf.mxu0
    %v1211 = vadd.f32 %v1101, %v1210
    %1212 = vmatmul.f32.gmra.mxu0 %v1060
    %v1213 = vpop.f32.mrf.mxu0
    %v1214 = vadd.f32 %v1101, %v1213
    %1215 = vdwg.mxu0
    %1216 = vmatpush.msra.mxu0 %v1094
    %1217 = vmatpush.msra.mxu0 %v1093
    %1218 = vmatpush.msra.mxu0 %v1092
    %1219 = vmatpush.msra.mxu0 %v1091
    %1220 = vmatpush.msra.mxu0 %v1090
    %1221 = vmatpush.msra.mxu0 %v1089
    %1222 = vmatpush.msra.mxu0 %v1088
    %1223 = vmatpush.msra.mxu0 %v1087
    %1224 = vmatpush.msra.mxu0 %v1086
    %1225 = vmatpush.msra.mxu0 %v1085
    %1226 = vmatpush.msra.mxu0 %v1084
    %1227 = vmatpush.msra.mxu0 %v1083
    %1228 = vmatpush.msra.mxu0 %v1082
    %1229 = vmatpush.msra.mxu0 %v1081
    %1230 = vmatpush.msra.mxu0 %v1080
    %1231 = vmatpush.msra.mxu0 %v1079
    %1232 = vmatmul.f32.gmra.mxu0 %v1016
    %v1233 = vpop.f32.mrf.mxu0
    %v1234 = vadd.f32 %v1169, %v1233
    %1235 = vmatmul.f32.gmra.mxu0 %v1019
    %v1236 = vpop.f32.mrf.mxu0
    %v1237 = vadd.f32 %v1172, %v1236
    %1238 = vmatmul.f32.gmra.mxu0 %v1022
    %v1239 = vpop.f32.mrf.mxu0
    %v1240 = vadd.f32 %v1175, %v1239
    %1241 = vmatmul.f32.gmra.mxu0 %v1025
    %v1242 = vpop.f32.mrf.mxu0
    %v1243 = vadd.f32 %v1178, %v1242
    %1244 = vmatmul.f32.gmra.mxu0 %v1028
    %v1245 = vpop.f32.mrf.mxu0
    %v1246 = vadd.f32 %v1181, %v1245
    %1247 = vmatmul.f32.gmra.mxu0 %v1031
    %v1248 = vpop.f32.mrf.mxu0
    %v1249 = vadd.f32 %v1184, %v1248
    %1250 = vmatmul.f32.gmra.mxu0 %v1034
    %v1251 = vpop.f32.mrf.mxu0
    %v1252 = vadd.f32 %v1187, %v1251
    %1253 = vmatmul.f32.gmra.mxu0 %v1037
    %v1254 = vpop.f32.mrf.mxu0
    %v1255 = vadd.f32 %v1190, %v1254
    %1256 = vmatmul.f32.gmra.mxu0 %v1040
    %v1257 = vpop.f32.mrf.mxu0
    %v1258 = vadd.f32 %v1193, %v1257
    %1259 = vmatmul.f32.gmra.mxu0 %v1043
    %v1260 = vpop.f32.mrf.mxu0
    %v1261 = vadd.f32 %v1196, %v1260
    %1262 = vmatmul.f32.gmra.mxu0 %v1046
    %v1263 = vpop.f32.mrf.mxu0
    %v1264 = vadd.f32 %v1199, %v1263
    %1265 = vmatmul.f32.gmra.mxu0 %v1049
    %v1266 = vpop.f32.mrf.mxu0
    %v1267 = vadd.f32 %v1202, %v1266
    %1268 = vmatmul.f32.gmra.mxu0 %v1052
    %v1269 = vpop.f32.mrf.mxu0
    %v1270 = vadd.f32 %v1205, %v1269
    %1271 = vmatmul.f32.gmra.mxu0 %v1055
    %v1272 = vpop.f32.mrf.mxu0
    %v1273 = vadd.f32 %v1208, %v1272
    %1274 = vmatmul.f32.gmra.mxu0 %v1058
    %v1275 = vpop.f32.mrf.mxu0
    %v1276 = vadd.f32 %v1211, %v1275
    %1277 = vmatmul.f32.gmra.mxu0 %v1061
    %v1278 = vpop.f32.mrf.mxu0
    %v1279 = vadd.f32 %v1214, %v1278
    %1280 = vdwg.mxu0
    %1281 = vmatpush.msra.mxu0 0.0
    %1282 = vmatpush.msra.mxu0 0.0
    %1283 = vmatpush.msra.mxu0 0.0
    %1284 = vmatpush.msra.mxu0 0.0
    %1285 = vmatpush.msra.mxu0 0.0
    %1286 = vmatpush.msra.mxu0 0.0
    %1287 = vmatpush.msra.mxu0 0.0
    %1288 = vmatpush.msra.mxu0 0.0
    %1289 = vmatpush.msra.mxu0 0.0
    %1290 = vmatpush.msra.mxu0 0.0
    %1291 = vmatpush.msra.mxu0 0.0
    %1292 = vmatpush.msra.mxu0 0.0
    %1293 = vmatpush.msra.mxu0 %v1098
    %1294 = vmatpush.msra.mxu0 %v1097
    %1295 = vmatpush.msra.mxu0 %v1096
    %1296 = vmatpush.msra.mxu0 %v1095
    %1297 = vmatmul.f32.gmra.mxu0 %v1104
    %v1298 = vpop.f32.mrf.mxu0
    %v1299 = vadd.f32 %v1234, %v1298
    %1300 = vmatmul.f32.gmra.mxu0 %v1107
    %v1301 = vpop.f32.mrf.mxu0
    %v1302 = vadd.f32 %v1237, %v1301
    %1303 = vmatmul.f32.gmra.mxu0 %v1110
    %v1304 = vpop.f32.mrf.mxu0
    %v1305 = vadd.f32 %v1240, %v1304
    %1306 = vmatmul.f32.gmra.mxu0 %v1113
    %v1307 = vpop.f32.mrf.mxu0
    %v1308 = vadd.f32 %v1243, %v1307
    %1309 = vmatmul.f32.gmra.mxu0 %v1116
    %v1310 = vpop.f32.mrf.mxu0
    %v1311 = vadd.f32 %v1246, %v1310
    %1312 = vmatmul.f32.gmra.mxu0 %v1119
    %v1313 = vpop.f32.mrf.mxu0
    %v1314 = vadd.f32 %v1249, %v1313
    %1315 = vmatmul.f32.gmra.mxu0 %v1122
    %v1316 = vpop.f32.mrf.mxu0
    %v1317 = vadd.f32 %v1252, %v1316
    %1318 = vmatmul.f32.gmra.mxu0 %v1125
    %v1319 = vpop.f32.mrf.mxu0
    %v1320 = vadd.f32 %v1255, %v1319
    %1321 = vmatmul.f32.gmra.mxu0 %v1128
    %v1322 = vpop.f32.mrf.mxu0
    %v1323 = vadd.f32 %v1258, %v1322
    %1324 = vmatmul.f32.gmra.mxu0 %v1131
    %v1325 = vpop.f32.mrf.mxu0
    %v1326 = vadd.f32 %v1261, %v1325
    %1327 = vmatmul.f32.gmra.mxu0 %v1134
    %v1328 = vpop.f32.mrf.mxu0
    %v1329 = vadd.f32 %v1264, %v1328
    %1330 = vmatmul.f32.gmra.mxu0 %v1137
    %v1331 = vpop.f32.mrf.mxu0
    %v1332 = vadd.f32 %v1267, %v1331
    %1333 = vmatmul.f32.gmra.mxu0 %v1140
    %v1334 = vpop.f32.mrf.mxu0
    %v1335 = vadd.f32 %v1270, %v1334
    %1336 = vmatmul.f32.gmra.mxu0 %v1143
    %v1337 = vpop.f32.mrf.mxu0
    %v1338 = vadd.f32 %v1273, %v1337
    %1339 = vmatmul.f32.gmra.mxu0 %v1146
    %v1340 = vpop.f32.mrf.mxu0
    %v1341 = vadd.f32 %v1276, %v1340
    %1342 = vmatmul.f32.gmra.mxu0 %v1149
    %v1343 = vpop.f32.mrf.mxu0
    %v1344 = vadd.f32 %v1279, %v1343
    %1345 = vdwg.mxu0
    %1362 = vrot.lane.b32.xlu0 %v207, 96
    %v1363 = vpop.permute.xlu0 %1362
    %1364 = vrot.lane.b32.xlu0 %v210, 96
    %v1365 = vpop.permute.xlu0 %1364
    %1366 = vrot.lane.b32.xlu0 %v213, 96
    %v1367 = vpop.permute.xlu0 %1366
    %1368 = vrot.lane.b32.xlu0 %v216, 96
    %v1369 = vpop.permute.xlu0 %1368
    %1370 = vrot.lane.b32.xlu0 %v219, 96
    %v1371 = vpop.permute.xlu0 %1370
    %1372 = vrot.lane.b32.xlu0 %v222, 96
    %v1373 = vpop.permute.xlu0 %1372
    %1374 = vrot.lane.b32.xlu0 %v225, 96
    %v1375 = vpop.permute.xlu0 %1374
    %1376 = vrot.lane.b32.xlu0 %v228, 96
    %v1377 = vpop.permute.xlu0 %1376
    %1378 = vrot.lane.b32.xlu0 %v231, 96
    %v1379 = vpop.permute.xlu0 %1378
    %1380 = vrot.lane.b32.xlu0 %v234, 96
    %v1381 = vpop.permute.xlu0 %1380
    %1382 = vrot.lane.b32.xlu0 %v237, 96
    %v1383 = vpop.permute.xlu0 %1382
    %1384 = vrot.lane.b32.xlu0 %v240, 96
    %v1385 = vpop.permute.xlu0 %1384
    %1386 = vrot.lane.b32.xlu0 %v243, 96
    %v1387 = vpop.permute.xlu0 %1386
    %1388 = vrot.lane.b32.xlu0 %v246, 96
    %v1389 = vpop.permute.xlu0 %1388
    %1390 = vrot.lane.b32.xlu0 %v249, 96
    %v1391 = vpop.permute.xlu0 %1390
    %1392 = vrot.lane.b32.xlu0 %v252, 96
    %v1393 = vpop.permute.xlu0 %1392
    %v1410 = vadd.f32 %v1299, %v1363
    %v1411 = vadd.f32 %v1302, %v1365
    %v1412 = vadd.f32 %v1305, %v1367
    %v1413 = vadd.f32 %v1308, %v1369
    %v1414 = vadd.f32 %v1311, %v1371
    %v1415 = vadd.f32 %v1314, %v1373
    %v1416 = vadd.f32 %v1317, %v1375
    %v1417 = vadd.f32 %v1320, %v1377
    %v1418 = vadd.f32 %v1323, %v1379
    %v1419 = vadd.f32 %v1326, %v1381
    %v1420 = vadd.f32 %v1329, %v1383
    %v1421 = vadd.f32 %v1332, %v1385
    %v1422 = vadd.f32 %v1335, %v1387
    %v1423 = vadd.f32 %v1338, %v1389
    %v1424 = vadd.f32 %v1341, %v1391
    %v1425 = vadd.f32 %v1344, %v1393
    %v1426 = vmax.f32 %v1410, 0.0
    %v1427 = vmax.f32 %v1411, 0.0
    %v1428 = vmax.f32 %v1412, 0.0
    %v1429 = vmax.f32 %v1413, 0.0
    %v1430 = vmax.f32 %v1414, 0.0
    %v1431 = vmax.f32 %v1415, 0.0
    %v1432 = vmax.f32 %v1416, 0.0
    %v1433 = vmax.f32 %v1417, 0.0
    %v1434 = vmax.f32 %v1418, 0.0
    %v1435 = vmax.f32 %v1419, 0.0
    %v1436 = vmax.f32 %v1420, 0.0
    %v1437 = vmax.f32 %v1421, 0.0
    %v1438 = vmax.f32 %v1422, 0.0
    %v1439 = vmax.f32 %v1423, 0.0
    %v1440 = vmax.f32 %v1424, 0.0
    %v1441 = vmax.f32 %v1425, 0.0
    %1442 = vst.msk [vmem:[#allocation4] sm:$0xff] %vm270, %v1426
    %1443 = vst.msk [vmem:[#allocation4 + $0x8] sm:$0xff] %vm270, %v1427
    %1444 = vst.msk [vmem:[#allocation4 + $0x10] sm:$0xff] %vm270, %v1428
    %1445 = vst.msk [vmem:[#allocation4 + $0x18] sm:$0xff] %vm270, %v1429
    %1446 = vst.msk [vmem:[#allocation4 + $0x20] sm:$0xff] %vm270, %v1430
    %1447 = vst.msk [vmem:[#allocation4 + $0x28] sm:$0xff] %vm270, %v1431
    %1448 = vst.msk [vmem:[#allocation4 + $0x30] sm:$0xff] %vm270, %v1432
    %1449 = vst.msk [vmem:[#allocation4 + $0x38] sm:$0xff] %vm270, %v1433
    %1450 = vst.msk [vmem:[#allocation4 + $0x40] sm:$0xff] %vm270, %v1434
    %1451 = vst.msk [vmem:[#allocation4 + $0x48] sm:$0xff] %vm270, %v1435
    %1452 = vst.msk [vmem:[#allocation4 + $0x50] sm:$0xff] %vm270, %v1436
    %1453 = vst.msk [vmem:[#allocation4 + $0x58] sm:$0xff] %vm270, %v1437
    %1454 = vst.msk [vmem:[#allocation4 + $0x60] sm:$0xff] %vm270, %v1438
    %1455 = vst.msk [vmem:[#allocation4 + $0x68] sm:$0xff] %vm270, %v1439
    %1456 = vst.msk [vmem:[#allocation4 + $0x70] sm:$0xff] %vm270, %v1440
    %1457 = vst.msk [vmem:[#allocation4 + $0x78] sm:$0xff] %vm270, %v1441
    // Predicated region
    $region22: #{_forward_nhwc_jit.1} parent=1 // pred_check
      _
    $region23: #{_forward_nhwc_jit.1} parent=1 // pred_check_branch
      %1459 = sbr.rel (0) target = $region25
    $region24: #{_forward_nhwc_jit.1} parent=1 // pred_region
      %1461 = vsyncadd [#allocation5], 0
      %s1462 = sshll.u32 [#allocation4], 4
      %s1463 = int_to_ptr.vmem [resolvable:$true] %s1462
      %s1464 = sshll.u32 %s5, 4
      %s1465 = int_to_ptr.hbm [resolvable:$true] %s1464
      %1470 = dma.vmem_to_hbm [thread:$0]  %s1463, 2048, %s1465, [#allocation5], 128, 128, 8
    $region25: #{_forward_nhwc_jit.1} parent=1 // pred_fallthru
      _
    // Predicated region
    $region26: #{_forward_nhwc_jit.1} parent=1 // pred_check
      _
    $region27: #{_forward_nhwc_jit.1} parent=1 // pred_check_branch
      %1472 = sbr.rel (0) target = $region29
    $region28: #{_forward_nhwc_jit.1} parent=1 // pred_region
      %1474 = dma.done [#allocation5], 2048
    $region29: #{_forward_nhwc_jit.1} parent=1 // pred_fallthru
      _
    %1475 = vsyncpa [#allocation5], 1

</llo_original>
